<compile_context>
chip_gen: v6e
topology: v6e:2x2x1
jax: 0.10.0
libtpu: 0.0.40
codegen_flags: <defaults>
</compile_context>

<pallas_src>
import math
from functools import partial

import numpy as np
import jax
import jax.numpy as jnp
from jax.experimental import pallas as pl
from jax.experimental.pallas import tpu as pltpu

# ---- problem sizes (small, consistent with the module's forward) ------------
SIGMA = 0.5
N, C_IN, H, W = 2, 4, 16, 16
C_OUT = 8
NUM_CLASSES = 10
KH = KW = 3
FEAT_DIM = C_OUT * H * W          # 2048
BN_EPS = 1e-5
LANE = 128                        # lane width; (W+2)*C_IN = 72 <= 128
WCO = W * C_OUT                   # 128 (lane-dense conv output width)

assert (W + 2) * C_IN <= LANE and WCO == 128 and H % 8 == 0


# =============================== fused kernel ================================
def resnet_fused_kernel(xp_ref, wt_ref, scale_ref, bias_ref, wfc_ref, bfc_ref,
                        o_ref, flat_ref, *, sigma, use_mean):
    """Whole forward pass in one kernel.

    xp_ref:    (N, H+2, LANE)       zero-padded NHWC input, image rows on lanes
    wt_ref:    (KH, LANE, WCO)      block-Toeplitz conv weight (host-packed)
    scale_ref: (1, WCO)             BN scale, tiled over w
    bias_ref:  (1, WCO)             BN bias, tiled over w
    wfc_ref:   (FEAT_DIM, K)        fc weight, rows permuted to NHWC-flatten
    bfc_ref:   (1, K)
    o_ref:     (N, 1)
    flat_ref:  VMEM scratch (N, FEAT_DIM)
    """
    wt = wt_ref[...]                                           # (KH, 128, 128)

    # conv as 3 K-aligned GEMMs (one per kernel row) -> lane-dense (32, 128)
    acc = jnp.zeros((N * H, WCO), jnp.float32)
    for kh in range(KH):
        slab = xp_ref[:, kh:kh + H, :].reshape(N * H, LANE)    # (32, 128)
        acc = acc + jnp.dot(slab, wt[kh],
                            preferred_element_type=jnp.float32)

    feat = jnp.maximum(acc * scale_ref[...] + bias_ref[...], 0.0)   # BN + ReLU

    # row-major flatten into (N, H*W*C_OUT); the NHWC-vs-NCHW permutation is
    # already folded into wfc, so plain aligned 128-lane slab copies suffice.
    for n in range(N):
        for h in range(H):
            flat_ref[n:n + 1, h * WCO:(h + 1) * WCO] = \
                feat[n * H + h:n * H + h + 1, :]

    logits = jnp.dot(flat_ref[...], wfc_ref[...],
                     preferred_element_type=jnp.float32) + bfc_ref[...]  # (N,K)

    # 2*sigma * max(softmax(l)) == 2*sigma / sum(exp(l - max(l)))
    m = jnp.max(logits, axis=1, keepdims=True)
    s = jnp.sum(jnp.exp(logits - m), axis=1, keepdims=True)
    y = (2.0 * sigma) * pl.reciprocal(s, approx=True)
    if use_mean:
        y = y - jnp.mean(y, axis=0, keepdims=True) + sigma
    o_ref[...] = y.astype(o_ref.dtype)


def _fused_call(xp, wt, scale, bias, wfc, bfc, *, sigma, use_mean):
    kern = partial(resnet_fused_kernel, sigma=sigma, use_mean=use_mean)
    return pl.pallas_call(
        kern,
        out_shape=jax.ShapeDtypeStruct((N, 1), jnp.float32),
        grid=(1,),
        in_specs=[
            pl.BlockSpec((N, H + 2, LANE), lambda i: (0, 0, 0)),
            pl.BlockSpec((KH, LANE, WCO), lambda i: (0, 0, 0)),
            pl.BlockSpec((1, WCO), lambda i: (0, 0)),
            pl.BlockSpec((1, WCO), lambda i: (0, 0)),
            pl.BlockSpec((FEAT_DIM, NUM_CLASSES), lambda i: (0, 0)),
            pl.BlockSpec((1, NUM_CLASSES), lambda i: (0, 0)),
        ],
        out_specs=pl.BlockSpec((N, 1), lambda i: (0, 0)),
        scratch_shapes=[pltpu.VMEM((N, FEAT_DIM), jnp.float32)],
    )(xp, wt, scale, bias, wfc, bfc)


@partial(jax.jit, static_argnums=(2, 3))
def resnet_forward(x_nchw, packed, sigma=SIGMA, mean=True):
    # NCHW -> NHWC(2D) + zero pad to (N, H+2, 128); one tiny XLA-fused op.
    x2d = jnp.transpose(x_nchw, (0, 2, 3, 1)).reshape(N, H, W * C_IN)
    xp = jnp.pad(x2d, ((0, 0), (1, 1), (C_IN, LANE - (W + 1) * C_IN)))
    y = _fused_call(xp, packed["wt"], packed["scale"], packed["bias"],
                    packed["wfc"], packed["bfc"], sigma=sigma, use_mean=mean)
    return y.reshape(N)


# ======================= host-side parameter packing =========================
def pack_params(p):
    """PyTorch-native params -> kernel layouts (done once, off the hot path)."""
    w = np.asarray(p["conv_w"], np.float32)                  # (C_OUT,C_IN,KH,KW)
    wt = np.zeros((KH, LANE, WCO), np.float32)               # block-Toeplitz
    for kh in range(KH):
        for kw in range(KW):
            tap = w[:, :, kh, kw].T                          # (C_IN, C_OUT)
            for wc in range(W):
                wp = wc + kw                                 # padded column idx
                wt[kh, wp * C_IN:(wp + 1) * C_IN,
                   wc * C_OUT:(wc + 1) * C_OUT] = tap

    scale = np.asarray(p["bn_gamma"]) / np.sqrt(np.asarray(p["bn_var"]) + BN_EPS)
    bias = np.asarray(p["bn_beta"]) - np.asarray(p["bn_mean"]) * scale
    scale_t = np.tile(scale.astype(np.float32), W).reshape(1, WCO)
    bias_t = np.tile(bias.astype(np.float32), W).reshape(1, WCO)

    # fold PyTorch's NCHW flatten into the fc weight rows (NHWC flatten order)
    fc_w = np.asarray(p["fc_w"], np.float32)                 # (K, C_OUT*H*W)
    wfc = fc_w.reshape(NUM_CLASSES, C_OUT, H, W).transpose(2, 3, 1, 0) \
              .reshape(FEAT_DIM, NUM_CLASSES)
    bfc = np.asarray(p["fc_b"], np.float32).reshape(1, NUM_CLASSES)

    return {"wt": jnp.asarray(wt), "scale": jnp.asarray(scale_t),
            "bias": jnp.asarray(bias_t), "wfc": jnp.asarray(wfc),
            "bfc": jnp.asarray(bfc)}


# ============================ reference (pure JAX) ============================
def reference_forward(x_nchw, params, sigma=SIGMA, mean=True):
    w_hwio = jnp.transpose(params["conv_w"], (2, 3, 1, 0))   # OIHW -> HWIO
    xh = jnp.transpose(x_nchw, (0, 2, 3, 1))
    xp = jnp.pad(xh, ((0, 0), (1, 1), (1, 1), (0, 0)))
    out = jnp.zeros((N, H, W, C_OUT), jnp.float32)
    for kh in range(KH):
        for kw in range(KW):
            out = out + jnp.einsum("nhwc,cd->nhwd",
                                   xp[:, kh:kh + H, kw:kw + W, :],
                                   w_hwio[kh, kw])
    scale = params["bn_gamma"] / jnp.sqrt(params["bn_var"] + BN_EPS)
    bias = params["bn_beta"] - params["bn_mean"] * scale
    out = jnp.maximum(out * scale.reshape(1, 1, 1, -1)
                      + bias.reshape(1, 1, 1, -1), 0.0)
    flat = jnp.transpose(out, (0, 3, 1, 2)).reshape(N, FEAT_DIM)  # NCHW flatten
    logits = flat @ params["fc_w"].T + params["fc_b"]
    prob = jax.nn.softmax(logits, axis=1)
    y = 2.0 * sigma * jnp.max(prob, axis=1)
    if mean:
        y = y - jnp.mean(y) + sigma
    return y


# ============================ parameter init ==================================
def init_params(key):
    k1, k2, k3, k4, k5, k6 = jax.random.split(key, 6)
    conv_w = jax.random.normal(k1, (C_OUT, C_IN, KH, KW), jnp.float32) \
        * (1.0 / math.sqrt(KH * KW * C_IN))
    gamma = 1.0 + 0.1 * jax.random.normal(k2, (C_OUT,), jnp.float32)
    beta = 0.1 * jax.random.normal(k3, (C_OUT,), jnp.float32)
    run_mean = 0.05 * jax.random.normal(k4, (C_OUT,), jnp.float32)
    run_var = 1.0 + 0.1 * jnp.abs(jax.random.normal(k5, (C_OUT,), jnp.float32))
    fc_w = jax.random.normal(k6, (NUM_CLASSES, FEAT_DIM), jnp.float32) \
        * (1.0 / math.sqrt(FEAT_DIM))
    fc_b = 0.01 * jnp.arange(NUM_CLASSES, dtype=jnp.float32)
    return {"conv_w": conv_w, "bn_gamma": gamma, "bn_beta": beta,
            "bn_mean": run_mean, "bn_var": run_var,
            "fc_w": fc_w, "fc_b": fc_b}


# ================================== main ======================================
if __name__ == "__main__":
    key = jax.random.PRNGKey(0)
    kp, kx = jax.random.split(key)
    params = init_params(kp)
    packed = pack_params(params)
    x = jax.random.normal(kx, (N, C_IN, H, W), jnp.float32)

    out = jax.block_until_ready(resnet_forward(x, packed, SIGMA, True))
    ref = jax.block_until_ready(reference_forward(x, params, SIGMA, True))
    assert out.shape == (N,)
    assert jnp.allclose(out, ref, rtol=1e-3, atol=1e-3), (out, ref)

    # also exercise the mean=False branch
    out_nm = jax.block_until_ready(resnet_forward(x, packed, SIGMA, False))
    ref_nm = reference_forward(x, params, SIGMA, False)
    assert jnp.allclose(out_nm, ref_nm, rtol=1e-3, atol=1e-3), (out_nm, ref_nm)

    print("KERNEL_OK")
</pallas_src>

<mosaic_0001>
module attributes {stable_mosaic.version = 11 : i64} {
  func.func @resnet_fused_kernel(%arg0: i32, %arg1: memref<2x18x128xf32, #tpu.memory_space<vmem>>, %arg2: memref<3x128x128xf32, #tpu.memory_space<vmem>>, %arg3: memref<1x128xf32, #tpu.memory_space<vmem>>, %arg4: memref<1x128xf32, #tpu.memory_space<vmem>>, %arg5: memref<2048x10xf32, #tpu.memory_space<vmem>>, %arg6: memref<1x10xf32, #tpu.memory_space<vmem>>, %arg7: memref<2x1xf32, #tpu.memory_space<vmem>>, %arg8: memref<2x2048xf32, #tpu.memory_space<vmem>>) attributes {dimension_semantics = [#tpu.dimension_semantics<arbitrary>], iteration_bounds = array<i64: 1>, scalar_prefetch = 0 : i64, scratch_operands = 1 : i64, tpu.core_type = #tpu.core_type<tc>, window_params = [{pipeline_mode = #tpu.pipeline_mode<synchronous>, transform_indices = @transform_0, window_bounds = array<i64: 2, 18, 128>}, {pipeline_mode = #tpu.pipeline_mode<synchronous>, transform_indices = @transform_1, window_bounds = array<i64: 3, 128, 128>}, {pipeline_mode = #tpu.pipeline_mode<synchronous>, transform_indices = @transform_2, window_bounds = array<i64: 1, 128>}, {pipeline_mode = #tpu.pipeline_mode<synchronous>, transform_indices = @transform_3, window_bounds = array<i64: 1, 128>}, {pipeline_mode = #tpu.pipeline_mode<synchronous>, transform_indices = @transform_4, window_bounds = array<i64: 2048, 10>}, {pipeline_mode = #tpu.pipeline_mode<synchronous>, transform_indices = @transform_5, window_bounds = array<i64: 1, 10>}, {pipeline_mode = #tpu.pipeline_mode<synchronous>, transform_indices = @transform_6, window_bounds = array<i64: 2, 1>}]} {
    %c0 = arith.constant 0 : index
    %c0_0 = arith.constant 0 : index
    %c0_1 = arith.constant 0 : index
    %0 = vector.load %arg2[%c0, %c0_0, %c0_1] : memref<3x128x128xf32, #tpu.memory_space<vmem>>, vector<3x128x128xf32>
    %cst = arith.constant 0.000000e+00 : f32
    %1 = vector.broadcast %cst : f32 to vector<32x128xf32>
    %c0_2 = arith.constant 0 : index
    %c0_3 = arith.constant 0 : index
    %c0_4 = arith.constant 0 : index
    %2 = vector.load %arg1[%c0_2, %c0_3, %c0_4] : memref<2x18x128xf32, #tpu.memory_space<vmem>>, vector<2x16x128xf32>
    %3 = vector.shape_cast %2 : vector<2x16x128xf32> to vector<32x128xf32>
    %4 = vector.extract_strided_slice %0 {offsets = [0, 0, 0], sizes = [1, 128, 128], strides = [1, 1, 1]} : vector<3x128x128xf32> to vector<1x128x128xf32>
    %5 = vector.shape_cast %4 : vector<1x128x128xf32> to vector<128x128xf32>
    %cst_5 = arith.constant dense<0.000000e+00> : vector<32x128xf32>
    %6 = tpu.matmul %3, %5, %cst_5 {dimension_numbers = #tpu.dot_dimension_numbers<[1], [0], [0], [1], [0, 0, 1, 1], [], []>} : vector<32x128xf32>, vector<128x128xf32>, vector<32x128xf32> -> vector<32x128xf32>
    %7 = arith.addf %1, %6 : vector<32x128xf32>
    %c0_6 = arith.constant 0 : index
    %c1 = arith.constant 1 : index
    %c0_7 = arith.constant 0 : index
    %8 = vector.load %arg1[%c0_6, %c1, %c0_7] : memref<2x18x128xf32, #tpu.memory_space<vmem>>, vector<2x16x128xf32>
    %9 = vector.shape_cast %8 : vector<2x16x128xf32> to vector<32x128xf32>
    %10 = vector.extract_strided_slice %0 {offsets = [1, 0, 0], sizes = [1, 128, 128], strides = [1, 1, 1]} : vector<3x128x128xf32> to vector<1x128x128xf32>
    %11 = vector.shape_cast %10 : vector<1x128x128xf32> to vector<128x128xf32>
    %cst_8 = arith.constant dense<0.000000e+00> : vector<32x128xf32>
    %12 = tpu.matmul %9, %11, %cst_8 {dimension_numbers = #tpu.dot_dimension_numbers<[1], [0], [0], [1], [0, 0, 1, 1], [], []>} : vector<32x128xf32>, vector<128x128xf32>, vector<32x128xf32> -> vector<32x128xf32>
    %13 = arith.addf %7, %12 : vector<32x128xf32>
    %c0_9 = arith.constant 0 : index
    %c2 = arith.constant 2 : index
    %c0_10 = arith.constant 0 : index
    %14 = vector.load %arg1[%c0_9, %c2, %c0_10] : memref<2x18x128xf32, #tpu.memory_space<vmem>>, vector<2x16x128xf32>
    %15 = vector.shape_cast %14 : vector<2x16x128xf32> to vector<32x128xf32>
    %16 = vector.extract_strided_slice %0 {offsets = [2, 0, 0], sizes = [1, 128, 128], strides = [1, 1, 1]} : vector<3x128x128xf32> to vector<1x128x128xf32>
    %17 = vector.shape_cast %16 : vector<1x128x128xf32> to vector<128x128xf32>
    %cst_11 = arith.constant dense<0.000000e+00> : vector<32x128xf32>
    %18 = tpu.matmul %15, %17, %cst_11 {dimension_numbers = #tpu.dot_dimension_numbers<[1], [0], [0], [1], [0, 0, 1, 1], [], []>} : vector<32x128xf32>, vector<128x128xf32>, vector<32x128xf32> -> vector<32x128xf32>
    %19 = arith.addf %13, %18 : vector<32x128xf32>
    %c0_12 = arith.constant 0 : index
    %c0_13 = arith.constant 0 : index
    %20 = vector.load %arg3[%c0_12, %c0_13] : memref<1x128xf32, #tpu.memory_space<vmem>>, vector<1x128xf32>
    %21 = vector.broadcast %20 : vector<1x128xf32> to vector<32x128xf32>
    %22 = arith.mulf %19, %21 : vector<32x128xf32>
    %c0_14 = arith.constant 0 : index
    %c0_15 = arith.constant 0 : index
    %23 = vector.load %arg4[%c0_14, %c0_15] : memref<1x128xf32, #tpu.memory_space<vmem>>, vector<1x128xf32>
    %24 = vector.broadcast %23 : vector<1x128xf32> to vector<32x128xf32>
    %25 = arith.addf %22, %24 : vector<32x128xf32>
    %cst_16 = arith.constant 0.000000e+00 : f32
    %26 = vector.broadcast %cst_16 : f32 to vector<32x128xf32>
    %27 = arith.maximumf %25, %26 : vector<32x128xf32>
    %28 = vector.extract_strided_slice %27 {offsets = [0, 0], sizes = [1, 128], strides = [1, 1]} : vector<32x128xf32> to vector<1x128xf32>
    %c0_17 = arith.constant 0 : index
    %c0_18 = arith.constant 0 : index
    %29 = vector.load %arg8[%c0_17, %c0_18] : memref<2x2048xf32, #tpu.memory_space<vmem>>, vector<1x128xf32>
    tpu.vector_store %arg8[%c0_17, %c0_18], %28 {strides = array<i32>} : memref<2x2048xf32, #tpu.memory_space<vmem>>, vector<1x128xf32>,
    %30 = vector.extract_strided_slice %27 {offsets = [1, 0], sizes = [1, 128], strides = [1, 1]} : vector<32x128xf32> to vector<1x128xf32>
    %c0_19 = arith.constant 0 : index
    %c128 = arith.constant 128 : index
    %31 = vector.load %arg8[%c0_19, %c128] : memref<2x2048xf32, #tpu.memory_space<vmem>>, vector<1x128xf32>
    tpu.vector_store %arg8[%c0_19, %c128], %30 {strides = array<i32>} : memref<2x2048xf32, #tpu.memory_space<vmem>>, vector<1x128xf32>,
    %32 = vector.extract_strided_slice %27 {offsets = [2, 0], sizes = [1, 128], strides = [1, 1]} : vector<32x128xf32> to vector<1x128xf32>
    %c0_20 = arith.constant 0 : index
    %c256 = arith.constant 256 : index
    %33 = vector.load %arg8[%c0_20, %c256] : memref<2x2048xf32, #tpu.memory_space<vmem>>, vector<1x128xf32>
    tpu.vector_store %arg8[%c0_20, %c256], %32 {strides = array<i32>} : memref<2x2048xf32, #tpu.memory_space<vmem>>, vector<1x128xf32>,
    %34 = vector.extract_strided_slice %27 {offsets = [3, 0], sizes = [1, 128], strides = [1, 1]} : vector<32x128xf32> to vector<1x128xf32>
    %c0_21 = arith.constant 0 : index
    %c384 = arith.constant 384 : index
    %35 = vector.load %arg8[%c0_21, %c384] : memref<2x2048xf32, #tpu.memory_space<vmem>>, vector<1x128xf32>
    tpu.vector_store %arg8[%c0_21, %c384], %34 {strides = array<i32>} : memref<2x2048xf32, #tpu.memory_space<vmem>>, vector<1x128xf32>,
    %36 = vector.extract_strided_slice %27 {offsets = [4, 0], sizes = [1, 128], strides = [1, 1]} : vector<32x128xf32> to vector<1x128xf32>
    %c0_22 = arith.constant 0 : index
    %c512 = arith.constant 512 : index
    %37 = vector.load %arg8[%c0_22, %c512] : memref<2x2048xf32, #tpu.memory_space<vmem>>, vector<1x128xf32>
    tpu.vector_store %arg8[%c0_22, %c512], %36 {strides = array<i32>} : memref<2x2048xf32, #tpu.memory_space<vmem>>, vector<1x128xf32>,
    %38 = vector.extract_strided_slice %27 {offsets = [5, 0], sizes = [1, 128], strides = [1, 1]} : vector<32x128xf32> to vector<1x128xf32>
    %c0_23 = arith.constant 0 : index
    %c640 = arith.constant 640 : index
    %39 = vector.load %arg8[%c0_23, %c640] : memref<2x2048xf32, #tpu.memory_space<vmem>>, vector<1x128xf32>
    tpu.vector_store %arg8[%c0_23, %c640], %38 {strides = array<i32>} : memref<2x2048xf32, #tpu.memory_space<vmem>>, vector<1x128xf32>,
    %40 = vector.extract_strided_slice %27 {offsets = [6, 0], sizes = [1, 128], strides = [1, 1]} : vector<32x128xf32> to vector<1x128xf32>
    %c0_24 = arith.constant 0 : index
    %c768 = arith.constant 768 : index
    %41 = vector.load %arg8[%c0_24, %c768] : memref<2x2048xf32, #tpu.memory_space<vmem>>, vector<1x128xf32>
    tpu.vector_store %arg8[%c0_24, %c768], %40 {strides = array<i32>} : memref<2x2048xf32, #tpu.memory_space<vmem>>, vector<1x128xf32>,
    %42 = vector.extract_strided_slice %27 {offsets = [7, 0], sizes = [1, 128], strides = [1, 1]} : vector<32x128xf32> to vector<1x128xf32>
    %c0_25 = arith.constant 0 : index
    %c896 = arith.constant 896 : index
    %43 = vector.load %arg8[%c0_25, %c896] : memref<2x2048xf32, #tpu.memory_space<vmem>>, vector<1x128xf32>
    tpu.vector_store %arg8[%c0_25, %c896], %42 {strides = array<i32>} : memref<2x2048xf32, #tpu.memory_space<vmem>>, vector<1x128xf32>,
    %44 = vector.extract_strided_slice %27 {offsets = [8, 0], sizes = [1, 128], strides = [1, 1]} : vector<32x128xf32> to vector<1x128xf32>
    %c0_26 = arith.constant 0 : index
    %c1024 = arith.constant 1024 : index
    %45 = vector.load %arg8[%c0_26, %c1024] : memref<2x2048xf32, #tpu.memory_space<vmem>>, vector<1x128xf32>
    tpu.vector_store %arg8[%c0_26, %c1024], %44 {strides = array<i32>} : memref<2x2048xf32, #tpu.memory_space<vmem>>, vector<1x128xf32>,
    %46 = vector.extract_strided_slice %27 {offsets = [9, 0], sizes = [1, 128], strides = [1, 1]} : vector<32x128xf32> to vector<1x128xf32>
    %c0_27 = arith.constant 0 : index
    %c1152 = arith.constant 1152 : index
    %47 = vector.load %arg8[%c0_27, %c1152] : memref<2x2048xf32, #tpu.memory_space<vmem>>, vector<1x128xf32>
    tpu.vector_store %arg8[%c0_27, %c1152], %46 {strides = array<i32>} : memref<2x2048xf32, #tpu.memory_space<vmem>>, vector<1x128xf32>,
    %48 = vector.extract_strided_slice %27 {offsets = [10, 0], sizes = [1, 128], strides = [1, 1]} : vector<32x128xf32> to vector<1x128xf32>
    %c0_28 = arith.constant 0 : index
    %c1280 = arith.constant 1280 : index
    %49 = vector.load %arg8[%c0_28, %c1280] : memref<2x2048xf32, #tpu.memory_space<vmem>>, vector<1x128xf32>
    tpu.vector_store %arg8[%c0_28, %c1280], %48 {strides = array<i32>} : memref<2x2048xf32, #tpu.memory_space<vmem>>, vector<1x128xf32>,
    %50 = vector.extract_strided_slice %27 {offsets = [11, 0], sizes = [1, 128], strides = [1, 1]} : vector<32x128xf32> to vector<1x128xf32>
    %c0_29 = arith.constant 0 : index
    %c1408 = arith.constant 1408 : index
    %51 = vector.load %arg8[%c0_29, %c1408] : memref<2x2048xf32, #tpu.memory_space<vmem>>, vector<1x128xf32>
    tpu.vector_store %arg8[%c0_29, %c1408], %50 {strides = array<i32>} : memref<2x2048xf32, #tpu.memory_space<vmem>>, vector<1x128xf32>,
    %52 = vector.extract_strided_slice %27 {offsets = [12, 0], sizes = [1, 128], strides = [1, 1]} : vector<32x128xf32> to vector<1x128xf32>
    %c0_30 = arith.constant 0 : index
    %c1536 = arith.constant 1536 : index
    %53 = vector.load %arg8[%c0_30, %c1536] : memref<2x2048xf32, #tpu.memory_space<vmem>>, vector<1x128xf32>
    tpu.vector_store %arg8[%c0_30, %c1536], %52 {strides = array<i32>} : memref<2x2048xf32, #tpu.memory_space<vmem>>, vector<1x128xf32>,
    %54 = vector.extract_strided_slice %27 {offsets = [13, 0], sizes = [1, 128], strides = [1, 1]} : vector<32x128xf32> to vector<1x128xf32>
    %c0_31 = arith.constant 0 : index
    %c1664 = arith.constant 1664 : index
    %55 = vector.load %arg8[%c0_31, %c1664] : memref<2x2048xf32, #tpu.memory_space<vmem>>, vector<1x128xf32>
    tpu.vector_store %arg8[%c0_31, %c1664], %54 {strides = array<i32>} : memref<2x2048xf32, #tpu.memory_space<vmem>>, vector<1x128xf32>,
    %56 = vector.extract_strided_slice %27 {offsets = [14, 0], sizes = [1, 128], strides = [1, 1]} : vector<32x128xf32> to vector<1x128xf32>
    %c0_32 = arith.constant 0 : index
    %c1792 = arith.constant 1792 : index
    %57 = vector.load %arg8[%c0_32, %c1792] : memref<2x2048xf32, #tpu.memory_space<vmem>>, vector<1x128xf32>
    tpu.vector_store %arg8[%c0_32, %c1792], %56 {strides = array<i32>} : memref<2x2048xf32, #tpu.memory_space<vmem>>, vector<1x128xf32>,
    %58 = vector.extract_strided_slice %27 {offsets = [15, 0], sizes = [1, 128], strides = [1, 1]} : vector<32x128xf32> to vector<1x128xf32>
    %c0_33 = arith.constant 0 : index
    %c1920 = arith.constant 1920 : index
    %59 = vector.load %arg8[%c0_33, %c1920] : memref<2x2048xf32, #tpu.memory_space<vmem>>, vector<1x128xf32>
    tpu.vector_store %arg8[%c0_33, %c1920], %58 {strides = array<i32>} : memref<2x2048xf32, #tpu.memory_space<vmem>>, vector<1x128xf32>,
    %60 = vector.extract_strided_slice %27 {offsets = [16, 0], sizes = [1, 128], strides = [1, 1]} : vector<32x128xf32> to vector<1x128xf32>
    %c1_34 = arith.constant 1 : index
    %c0_35 = arith.constant 0 : index
    %61 = vector.load %arg8[%c1_34, %c0_35] : memref<2x2048xf32, #tpu.memory_space<vmem>>, vector<1x128xf32>
    tpu.vector_store %arg8[%c1_34, %c0_35], %60 {strides = array<i32>} : memref<2x2048xf32, #tpu.memory_space<vmem>>, vector<1x128xf32>,
    %62 = vector.extract_strided_slice %27 {offsets = [17, 0], sizes = [1, 128], strides = [1, 1]} : vector<32x128xf32> to vector<1x128xf32>
    %c1_36 = arith.constant 1 : index
    %c128_37 = arith.constant 128 : index
    %63 = vector.load %arg8[%c1_36, %c128_37] : memref<2x2048xf32, #tpu.memory_space<vmem>>, vector<1x128xf32>
    tpu.vector_store %arg8[%c1_36, %c128_37], %62 {strides = array<i32>} : memref<2x2048xf32, #tpu.memory_space<vmem>>, vector<1x128xf32>,
    %64 = vector.extract_strided_slice %27 {offsets = [18, 0], sizes = [1, 128], strides = [1, 1]} : vector<32x128xf32> to vector<1x128xf32>
    %c1_38 = arith.constant 1 : index
    %c256_39 = arith.constant 256 : index
    %65 = vector.load %arg8[%c1_38, %c256_39] : memref<2x2048xf32, #tpu.memory_space<vmem>>, vector<1x128xf32>
    tpu.vector_store %arg8[%c1_38, %c256_39], %64 {strides = array<i32>} : memref<2x2048xf32, #tpu.memory_space<vmem>>, vector<1x128xf32>,
    %66 = vector.extract_strided_slice %27 {offsets = [19, 0], sizes = [1, 128], strides = [1, 1]} : vector<32x128xf32> to vector<1x128xf32>
    %c1_40 = arith.constant 1 : index
    %c384_41 = arith.constant 384 : index
    %67 = vector.load %arg8[%c1_40, %c384_41] : memref<2x2048xf32, #tpu.memory_space<vmem>>, vector<1x128xf32>
    tpu.vector_store %arg8[%c1_40, %c384_41], %66 {strides = array<i32>} : memref<2x2048xf32, #tpu.memory_space<vmem>>, vector<1x128xf32>,
    %68 = vector.extract_strided_slice %27 {offsets = [20, 0], sizes = [1, 128], strides = [1, 1]} : vector<32x128xf32> to vector<1x128xf32>
    %c1_42 = arith.constant 1 : index
    %c512_43 = arith.constant 512 : index
    %69 = vector.load %arg8[%c1_42, %c512_43] : memref<2x2048xf32, #tpu.memory_space<vmem>>, vector<1x128xf32>
    tpu.vector_store %arg8[%c1_42, %c512_43], %68 {strides = array<i32>} : memref<2x2048xf32, #tpu.memory_space<vmem>>, vector<1x128xf32>,
    %70 = vector.extract_strided_slice %27 {offsets = [21, 0], sizes = [1, 128], strides = [1, 1]} : vector<32x128xf32> to vector<1x128xf32>
    %c1_44 = arith.constant 1 : index
    %c640_45 = arith.constant 640 : index
    %71 = vector.load %arg8[%c1_44, %c640_45] : memref<2x2048xf32, #tpu.memory_space<vmem>>, vector<1x128xf32>
    tpu.vector_store %arg8[%c1_44, %c640_45], %70 {strides = array<i32>} : memref<2x2048xf32, #tpu.memory_space<vmem>>, vector<1x128xf32>,
    %72 = vector.extract_strided_slice %27 {offsets = [22, 0], sizes = [1, 128], strides = [1, 1]} : vector<32x128xf32> to vector<1x128xf32>
    %c1_46 = arith.constant 1 : index
    %c768_47 = arith.constant 768 : index
    %73 = vector.load %arg8[%c1_46, %c768_47] : memref<2x2048xf32, #tpu.memory_space<vmem>>, vector<1x128xf32>
    tpu.vector_store %arg8[%c1_46, %c768_47], %72 {strides = array<i32>} : memref<2x2048xf32, #tpu.memory_space<vmem>>, vector<1x128xf32>,
    %74 = vector.extract_strided_slice %27 {offsets = [23, 0], sizes = [1, 128], strides = [1, 1]} : vector<32x128xf32> to vector<1x128xf32>
    %c1_48 = arith.constant 1 : index
    %c896_49 = arith.constant 896 : index
    %75 = vector.load %arg8[%c1_48, %c896_49] : memref<2x2048xf32, #tpu.memory_space<vmem>>, vector<1x128xf32>
    tpu.vector_store %arg8[%c1_48, %c896_49], %74 {strides = array<i32>} : memref<2x2048xf32, #tpu.memory_space<vmem>>, vector<1x128xf32>,
    %76 = vector.extract_strided_slice %27 {offsets = [24, 0], sizes = [1, 128], strides = [1, 1]} : vector<32x128xf32> to vector<1x128xf32>
    %c1_50 = arith.constant 1 : index
    %c1024_51 = arith.constant 1024 : index
    %77 = vector.load %arg8[%c1_50, %c1024_51] : memref<2x2048xf32, #tpu.memory_space<vmem>>, vector<1x128xf32>
    tpu.vector_store %arg8[%c1_50, %c1024_51], %76 {strides = array<i32>} : memref<2x2048xf32, #tpu.memory_space<vmem>>, vector<1x128xf32>,
    %78 = vector.extract_strided_slice %27 {offsets = [25, 0], sizes = [1, 128], strides = [1, 1]} : vector<32x128xf32> to vector<1x128xf32>
    %c1_52 = arith.constant 1 : index
    %c1152_53 = arith.constant 1152 : index
    %79 = vector.load %arg8[%c1_52, %c1152_53] : memref<2x2048xf32, #tpu.memory_space<vmem>>, vector<1x128xf32>
    tpu.vector_store %arg8[%c1_52, %c1152_53], %78 {strides = array<i32>} : memref<2x2048xf32, #tpu.memory_space<vmem>>, vector<1x128xf32>,
    %80 = vector.extract_strided_slice %27 {offsets = [26, 0], sizes = [1, 128], strides = [1, 1]} : vector<32x128xf32> to vector<1x128xf32>
    %c1_54 = arith.constant 1 : index
    %c1280_55 = arith.constant 1280 : index
    %81 = vector.load %arg8[%c1_54, %c1280_55] : memref<2x2048xf32, #tpu.memory_space<vmem>>, vector<1x128xf32>
    tpu.vector_store %arg8[%c1_54, %c1280_55], %80 {strides = array<i32>} : memref<2x2048xf32, #tpu.memory_space<vmem>>, vector<1x128xf32>,
    %82 = vector.extract_strided_slice %27 {offsets = [27, 0], sizes = [1, 128], strides = [1, 1]} : vector<32x128xf32> to vector<1x128xf32>
    %c1_56 = arith.constant 1 : index
    %c1408_57 = arith.constant 1408 : index
    %83 = vector.load %arg8[%c1_56, %c1408_57] : memref<2x2048xf32, #tpu.memory_space<vmem>>, vector<1x128xf32>
    tpu.vector_store %arg8[%c1_56, %c1408_57], %82 {strides = array<i32>} : memref<2x2048xf32, #tpu.memory_space<vmem>>, vector<1x128xf32>,
    %84 = vector.extract_strided_slice %27 {offsets = [28, 0], sizes = [1, 128], strides = [1, 1]} : vector<32x128xf32> to vector<1x128xf32>
    %c1_58 = arith.constant 1 : index
    %c1536_59 = arith.constant 1536 : index
    %85 = vector.load %arg8[%c1_58, %c1536_59] : memref<2x2048xf32, #tpu.memory_space<vmem>>, vector<1x128xf32>
    tpu.vector_store %arg8[%c1_58, %c1536_59], %84 {strides = array<i32>} : memref<2x2048xf32, #tpu.memory_space<vmem>>, vector<1x128xf32>,
    %86 = vector.extract_strided_slice %27 {offsets = [29, 0], sizes = [1, 128], strides = [1, 1]} : vector<32x128xf32> to vector<1x128xf32>
    %c1_60 = arith.constant 1 : index
    %c1664_61 = arith.constant 1664 : index
    %87 = vector.load %arg8[%c1_60, %c1664_61] : memref<2x2048xf32, #tpu.memory_space<vmem>>, vector<1x128xf32>
    tpu.vector_store %arg8[%c1_60, %c1664_61], %86 {strides = array<i32>} : memref<2x2048xf32, #tpu.memory_space<vmem>>, vector<1x128xf32>,
    %88 = vector.extract_strided_slice %27 {offsets = [30, 0], sizes = [1, 128], strides = [1, 1]} : vector<32x128xf32> to vector<1x128xf32>
    %c1_62 = arith.constant 1 : index
    %c1792_63 = arith.constant 1792 : index
    %89 = vector.load %arg8[%c1_62, %c1792_63] : memref<2x2048xf32, #tpu.memory_space<vmem>>, vector<1x128xf32>
    tpu.vector_store %arg8[%c1_62, %c1792_63], %88 {strides = array<i32>} : memref<2x2048xf32, #tpu.memory_space<vmem>>, vector<1x128xf32>,
    %90 = vector.extract_strided_slice %27 {offsets = [31, 0], sizes = [1, 128], strides = [1, 1]} : vector<32x128xf32> to vector<1x128xf32>
    %c1_64 = arith.constant 1 : index
    %c1920_65 = arith.constant 1920 : index
    %91 = vector.load %arg8[%c1_64, %c1920_65] : memref<2x2048xf32, #tpu.memory_space<vmem>>, vector<1x128xf32>
    tpu.vector_store %arg8[%c1_64, %c1920_65], %90 {strides = array<i32>} : memref<2x2048xf32, #tpu.memory_space<vmem>>, vector<1x128xf32>,
    %c0_66 = arith.constant 0 : index
    %c0_67 = arith.constant 0 : index
    %92 = vector.load %arg8[%c0_66, %c0_67] : memref<2x2048xf32, #tpu.memory_space<vmem>>, vector<2x2048xf32>
    %c0_68 = arith.constant 0 : index
    %c0_69 = arith.constant 0 : index
    %93 = vector.load %arg5[%c0_68, %c0_69] : memref<2048x10xf32, #tpu.memory_space<vmem>>, vector<2048x10xf32>
    %cst_70 = arith.constant dense<0.000000e+00> : vector<2x10xf32>
    %94 = tpu.matmul %92, %93, %cst_70 {dimension_numbers = #tpu.dot_dimension_numbers<[1], [0], [0], [1], [0, 0, 1, 1], [], []>} : vector<2x2048xf32>, vector<2048x10xf32>, vector<2x10xf32> -> vector<2x10xf32>
    %c0_71 = arith.constant 0 : index
    %c0_72 = arith.constant 0 : index
    %95 = vector.load %arg6[%c0_71, %c0_72] : memref<1x10xf32, #tpu.memory_space<vmem>>, vector<1x10xf32>
    %96 = vector.broadcast %95 : vector<1x10xf32> to vector<2x10xf32>
    %97 = arith.addf %94, %96 : vector<2x10xf32>
    %cst_73 = arith.constant dense<0xFF800000> : vector<2xf32>
    %98 = vector.multi_reduction <maximumf>, %97, %cst_73 [1] : vector<2x10xf32> to vector<2xf32>
    %99 = vector.shape_cast %98 : vector<2xf32> to vector<2x1xf32>
    %100 = vector.broadcast %99 : vector<2x1xf32> to vector<2x10xf32>
    %101 = arith.subf %97, %100 : vector<2x10xf32>
    %102 = math.exp %101 : vector<2x10xf32>
    %cst_74 = arith.constant dense<0.000000e+00> : vector<2xf32>
    %103 = vector.multi_reduction <add>, %102, %cst_74 [1] : vector<2x10xf32> to vector<2xf32>
    %104 = vector.shape_cast %103 : vector<2xf32> to vector<2x1xf32>
    %105 = tpu.reciprocal %104 {approx = true} : vector<2x1xf32> -> vector<2x1xf32>
    %cst_75 = arith.constant 1.000000e+00 : f32
    %106 = vector.broadcast %cst_75 : f32 to vector<2x1xf32>
    %107 = arith.mulf %106, %105 : vector<2x1xf32>
    %cst_76 = arith.constant dense<0.000000e+00> : vector<1xf32>
    %108 = vector.multi_reduction <add>, %107, %cst_76 [0] : vector<2x1xf32> to vector<1xf32>
    %109 = vector.shape_cast %108 : vector<1xf32> to vector<1x1xf32>
    %cst_77 = arith.constant 2.000000e+00 : f32
    %110 = vector.broadcast %cst_77 : f32 to vector<1x1xf32>
    %111 = arith.divf %109, %110 : vector<1x1xf32>
    %112 = vector.broadcast %111 : vector<1x1xf32> to vector<2x1xf32>
    %113 = arith.subf %107, %112 : vector<2x1xf32>
    %cst_78 = arith.constant 5.000000e-01 : f32
    %114 = vector.broadcast %cst_78 : f32 to vector<2x1xf32>
    %115 = arith.addf %113, %114 : vector<2x1xf32>
    %c0_79 = arith.constant 0 : index
    %c0_80 = arith.constant 0 : index
    %116 = vector.load %arg7[%c0_79, %c0_80] : memref<2x1xf32, #tpu.memory_space<vmem>>, vector<2x1xf32>
    tpu.vector_store %arg7[%c0_79, %c0_80], %115 {strides = array<i32>} : memref<2x1xf32, #tpu.memory_space<vmem>>, vector<2x1xf32>,
    return
  }
  func.func @transform_0(%arg0: i32) -> (i32, i32, i32) {
    %c0_i32 = arith.constant 0 : i32
    %c0_i32_0 = arith.constant 0 : i32
    %c0_i32_1 = arith.constant 0 : i32
    %c0_i32_2 = arith.constant 0 : i32
    return %c0_i32, %c0_i32_0, %c0_i32_1 : i32, i32, i32
  }
  func.func @transform_1(%arg0: i32) -> (i32, i32, i32) {
    %c0_i32 = arith.constant 0 : i32
    %c0_i32_0 = arith.constant 0 : i32
    %c0_i32_1 = arith.constant 0 : i32
    %c0_i32_2 = arith.constant 0 : i32
    return %c0_i32, %c0_i32_0, %c0_i32_1 : i32, i32, i32
  }
  func.func @transform_2(%arg0: i32) -> (i32, i32) {
    %c0_i32 = arith.constant 0 : i32
    %c0_i32_0 = arith.constant 0 : i32
    %c0_i32_1 = arith.constant 0 : i32
    return %c0_i32, %c0_i32_0 : i32, i32
  }
  func.func @transform_3(%arg0: i32) -> (i32, i32) {
    %c0_i32 = arith.constant 0 : i32
    %c0_i32_0 = arith.constant 0 : i32
    %c0_i32_1 = arith.constant 0 : i32
    return %c0_i32, %c0_i32_0 : i32, i32
  }
  func.func @transform_4(%arg0: i32) -> (i32, i32) {
    %c0_i32 = arith.constant 0 : i32
    %c0_i32_0 = arith.constant 0 : i32
    %c0_i32_1 = arith.constant 0 : i32
    return %c0_i32, %c0_i32_0 : i32, i32
  }
  func.func @transform_5(%arg0: i32) -> (i32, i32) {
    %c0_i32 = arith.constant 0 : i32
    %c0_i32_0 = arith.constant 0 : i32
    %c0_i32_1 = arith.constant 0 : i32
    return %c0_i32, %c0_i32_0 : i32, i32
  }
  func.func @transform_6(%arg0: i32) -> (i32, i32) {
    %c0_i32 = arith.constant 0 : i32
    %c0_i32_0 = arith.constant 0 : i32
    %c0_i32_1 = arith.constant 0 : i32
    return %c0_i32, %c0_i32_0 : i32, i32
  }
}

</mosaic_0001>

<llo_original>
// kernel: resnet_forward.1
$region0: #{resnet_forward.1}
  #allocation0 [shape = 'u32[]', space=smem, size = 0x4, offset = 0x4, fixed_abs, tag = 'smem constant byte address 0x4 - core index']
  #allocation1 [shape = 'u32[144,128]{1,0:T(1,128)}', space=vmem, size = 0x12000, scoped, tag = 'internal scratch']
  #allocation2 [shape = 'f32[2,2048]{1,0:T(2,128)}', space=vmem, size = 0x4000, scoped, tag = 'scratch operand']
  %s0 = inlined_call_operand.vmem [shape: f32[2,18,128], index: 0, kind: input, shape index: {}]
  %s1 = inlined_call_operand.vmem [shape: f32[3,128,128], index: 1, kind: input, shape index: {}]
  %s2 = inlined_call_operand.vmem [shape: f32[1,128], index: 2, kind: input, shape index: {}]
  %s3 = inlined_call_operand.vmem [shape: f32[1,128], index: 3, kind: input, shape index: {}]
  %s4 = inlined_call_operand.vmem [shape: f32[2048,10], index: 4, kind: input, shape index: {}]
  %s5 = inlined_call_operand.vmem [shape: f32[1,10], index: 5, kind: input, shape index: {}]
  %s6 = inlined_call_operand.vmem [shape: f32[2,1], index: 6, kind: output, shape index: {}]
  %s7 = sld [smem:[#allocation0]]
  $region34: #{resnet_forward.1} parent=0
    _
  %s9 = ssub.s32 1, %s7
  %s10 = scalar_select 0, %s9, %s7
  // Predicated region
  $region2: #{resnet_forward.1} parent=0 // pred_check
    _
  $region3: #{resnet_forward.1} parent=0 // pred_check_branch
    %12 = sbr.rel (0) target = $region5
  $region4: #{resnet_forward.1} parent=0 // pred_region
    _
  $region5: #{resnet_forward.1} parent=0 // pred_fallthru
    _
  // Predicated region
  $region6: #{resnet_forward.1} parent=0 // pred_check
    _
  $region7: #{resnet_forward.1} parent=0 // pred_check_branch
    %14 = sbr.rel (0) target = $region9
  $region8: #{resnet_forward.1} parent=0 // pred_region
    _
  $region9: #{resnet_forward.1} parent=0 // pred_fallthru
    _
  // Predicated region
  $region10: #{resnet_forward.1} parent=0 // pred_check
    _
  $region11: #{resnet_forward.1} parent=0 // pred_check_branch
    %16 = sbr.rel (0) target = $region13
  $region12: #{resnet_forward.1} parent=0 // pred_region
    _
  $region13: #{resnet_forward.1} parent=0 // pred_fallthru
    _
  // Predicated region
  $region14: #{resnet_forward.1} parent=0 // pred_check
    _
  $region15: #{resnet_forward.1} parent=0 // pred_check_branch
    %18 = sbr.rel (0) target = $region17
  $region16: #{resnet_forward.1} parent=0 // pred_region
    _
  $region17: #{resnet_forward.1} parent=0 // pred_fallthru
    _
  // Predicated region
  $region18: #{resnet_forward.1} parent=0 // pred_check
    _
  $region19: #{resnet_forward.1} parent=0 // pred_check_branch
    %20 = sbr.rel (0) target = $region21
  $region20: #{resnet_forward.1} parent=0 // pred_region
    _
  $region21: #{resnet_forward.1} parent=0 // pred_fallthru
    _
  // Predicated region
  $region22: #{resnet_forward.1} parent=0 // pred_check
    _
  $region23: #{resnet_forward.1} parent=0 // pred_check_branch
    %22 = sbr.rel (0) target = $region25
  $region24: #{resnet_forward.1} parent=0 // pred_region
    _
  $region25: #{resnet_forward.1} parent=0 // pred_fallthru
    _
  %v23 = vld [vmem:[%s1] sm:$0xff]
  %v24 = vld [vmem:[%s1 + $0x8] sm:$0xff]
  %v25 = vld [vmem:[%s1 + $0x10] sm:$0xff]
  %v26 = vld [vmem:[%s1 + $0x18] sm:$0xff]
  %v27 = vld [vmem:[%s1 + $0x20] sm:$0xff]
  %v28 = vld [vmem:[%s1 + $0x28] sm:$0xff]
  %v29 = vld [vmem:[%s1 + $0x30] sm:$0xff]
  %v30 = vld [vmem:[%s1 + $0x38] sm:$0xff]
  %v31 = vld [vmem:[%s1 + $0x40] sm:$0xff]
  %v32 = vld [vmem:[%s1 + $0x48] sm:$0xff]
  %v33 = vld [vmem:[%s1 + $0x50] sm:$0xff]
  %v34 = vld [vmem:[%s1 + $0x58] sm:$0xff]
  %v35 = vld [vmem:[%s1 + $0x60] sm:$0xff]
  %v36 = vld [vmem:[%s1 + $0x68] sm:$0xff]
  %v37 = vld [vmem:[%s1 + $0x70] sm:$0xff]
  %v38 = vld [vmem:[%s1 + $0x78] sm:$0xff]
  %v39 = vld [vmem:[%s1 + $0x80] sm:$0xff]
  %v40 = vld [vmem:[%s1 + $0x88] sm:$0xff]
  %v41 = vld [vmem:[%s1 + $0x90] sm:$0xff]
  %v42 = vld [vmem:[%s1 + $0x98] sm:$0xff]
  %v43 = vld [vmem:[%s1 + $0xa0] sm:$0xff]
  %v44 = vld [vmem:[%s1 + $0xa8] sm:$0xff]
  %v45 = vld [vmem:[%s1 + $0xb0] sm:$0xff]
  %v46 = vld [vmem:[%s1 + $0xb8] sm:$0xff]
  %v47 = vld [vmem:[%s1 + $0xc0] sm:$0xff]
  %v48 = vld [vmem:[%s1 + $0xc8] sm:$0xff]
  %v49 = vld [vmem:[%s1 + $0xd0] sm:$0xff]
  %v50 = vld [vmem:[%s1 + $0xd8] sm:$0xff]
  %v51 = vld [vmem:[%s1 + $0xe0] sm:$0xff]
  %v52 = vld [vmem:[%s1 + $0xe8] sm:$0xff]
  %v53 = vld [vmem:[%s1 + $0xf0] sm:$0xff]
  %v54 = vld [vmem:[%s1 + $0xf8] sm:$0xff]
  %v55 = vld [vmem:[%s1 + $0x100] sm:$0xff]
  %v56 = vld [vmem:[%s1 + $0x108] sm:$0xff]
  %v57 = vld [vmem:[%s1 + $0x110] sm:$0xff]
  %v58 = vld [vmem:[%s1 + $0x118] sm:$0xff]
  %v59 = vld [vmem:[%s1 + $0x120] sm:$0xff]
  %v60 = vld [vmem:[%s1 + $0x128] sm:$0xff]
  %v61 = vld [vmem:[%s1 + $0x130] sm:$0xff]
  %v62 = vld [vmem:[%s1 + $0x138] sm:$0xff]
  %v63 = vld [vmem:[%s1 + $0x140] sm:$0xff]
  %v64 = vld [vmem:[%s1 + $0x148] sm:$0xff]
  %v65 = vld [vmem:[%s1 + $0x150] sm:$0xff]
  %v66 = vld [vmem:[%s1 + $0x158] sm:$0xff]
  %v67 = vld [vmem:[%s1 + $0x160] sm:$0xff]
  %v68 = vld [vmem:[%s1 + $0x168] sm:$0xff]
  %v69 = vld [vmem:[%s1 + $0x170] sm:$0xff]
  %v70 = vld [vmem:[%s1 + $0x178] sm:$0xff]
  %v71 = vld [vmem:[%s0] sm:$0xff]
  %v72 = vld [vmem:[%s0 + $0x8] sm:$0xff]
  %v73 = vld [vmem:[%s0 + $0x18] sm:$0xff]
  %v74 = vld [vmem:[%s0 + $0x20] sm:$0xff]
  %v75 = vld [vmem:[%s0 + $0x1] sm:$0xff]
  %v76 = vld [vmem:[%s0 + $0x9] sm:$0xff]
  %v77 = vld [vmem:[%s0 + $0x19] sm:$0xff]
  %v78 = vld [vmem:[%s0 + $0x21] sm:$0xff]
  %79 = vmatprep.subr.mxu0 0.0
  %80 = vmatpush1.msra.mxu0 %v54
  %81 = vmatprep.subr.mxu0 0.0
  %82 = vmatpush1.msra.mxu0 %v53
  %83 = vmatprep.subr.mxu0 0.0
  %84 = vmatpush1.msra.mxu0 %v52
  %85 = vmatprep.subr.mxu0 0.0
  %86 = vmatpush1.msra.mxu0 %v51
  %87 = vmatprep.subr.mxu0 0.0
  %88 = vmatpush1.msra.mxu0 %v50
  %89 = vmatprep.subr.mxu0 0.0
  %90 = vmatpush1.msra.mxu0 %v49
  %91 = vmatprep.subr.mxu0 0.0
  %92 = vmatpush1.msra.mxu0 %v48
  %93 = vmatprep.subr.mxu0 0.0
  %94 = vmatpush1.msra.mxu0 %v47
  %95 = vmatprep.subr.mxu0 0.0
  %96 = vmatpush1.msra.mxu0 %v46
  %97 = vmatprep.subr.mxu0 0.0
  %98 = vmatpush1.msra.mxu0 %v45
  %99 = vmatprep.subr.mxu0 0.0
  %100 = vmatpush1.msra.mxu0 %v44
  %101 = vmatprep.subr.mxu0 0.0
  %102 = vmatpush1.msra.mxu0 %v43
  %103 = vmatprep.subr.mxu0 0.0
  %104 = vmatpush1.msra.mxu0 %v42
  %105 = vmatprep.subr.mxu0 0.0
  %106 = vmatpush1.msra.mxu0 %v41
  %107 = vmatprep.subr.mxu0 0.0
  %108 = vmatpush1.msra.mxu0 %v40
  %109 = vmatprep.subr.mxu0 0.0
  %110 = vmatpush1.msra.mxu0 %v39
  %111 = vmatprep.subr.mxu0 0.0
  %112 = vmatpush2.msra.mxu0 0.0
  %113 = vmatprep.subr.mxu0 0.0
  %114 = vmatpush2.msra.mxu0 0.0
  %115 = vmatprep.subr.mxu0 0.0
  %116 = vmatpush2.msra.mxu0 0.0
  %117 = vmatprep.subr.mxu0 0.0
  %118 = vmatpush2.msra.mxu0 0.0
  %119 = vmatprep.subr.mxu0 0.0
  %120 = vmatpush2.msra.mxu0 0.0
  %121 = vmatprep.subr.mxu0 0.0
  %122 = vmatpush2.msra.mxu0 0.0
  %123 = vmatprep.subr.mxu0 0.0
  %124 = vmatpush2.msra.mxu0 0.0
  %125 = vmatprep.subr.mxu0 0.0
  %126 = vmatpush2.msra.mxu0 0.0
  %127 = vmatprep.subr.mxu0 0.0
  %128 = vmatpush2.msra.mxu0 0.0
  %129 = vmatprep.subr.mxu0 0.0
  %130 = vmatpush2.msra.mxu0 0.0
  %131 = vmatprep.subr.mxu0 0.0
  %132 = vmatpush2.msra.mxu0 0.0
  %133 = vmatprep.subr.mxu0 0.0
  %134 = vmatpush2.msra.mxu0 0.0
  %135 = vmatprep.subr.mxu0 0.0
  %136 = vmatpush2.msra.mxu0 0.0
  %137 = vmatprep.subr.mxu0 0.0
  %138 = vmatpush2.msra.mxu0 0.0
  %139 = vmatprep.subr.mxu0 0.0
  %140 = vmatpush2.msra.mxu0 0.0
  %141 = vmatprep.subr.mxu0 0.0
  %142 = vmatpush2.msra.mxu0 0.0
  %143 = vmatprep.mubr.f32.mxu0 0.0
  %144 = vmatmul.mubr.f32.gmra.mxu0 %v75
  %v145 = vpop.f32.mrf.mxu0
  %v146 = vadd.f32 0.0, %v145
  %v147 = vpop.f32.mrf.mxu0
  %148 = vmatprep.mubr.f32.mxu0 0.0
  %149 = vmatmul.mubr.f32.gmra.mxu0 %v76
  %v150 = vpop.f32.mrf.mxu0
  %v151 = vadd.f32 0.0, %v150
  %v152 = vpop.f32.mrf.mxu0
  %153 = vmatprep.mubr.f32.mxu0 0.0
  %154 = vmatmul.mubr.f32.gmra.mxu0 %v77
  %v155 = vpop.f32.mrf.mxu0
  %v156 = vadd.f32 0.0, %v155
  %v157 = vpop.f32.mrf.mxu0
  %158 = vmatprep.mubr.f32.mxu0 0.0
  %159 = vmatmul.mubr.f32.gmra.mxu0 %v78
  %v160 = vpop.f32.mrf.mxu0
  %v161 = vadd.f32 0.0, %v160
  %v162 = vpop.f32.mrf.mxu0
  %163 = vdwg.mxu0
  %164 = vmatprep.subr.mxu0 0.0
  %165 = vmatpush1.msra.mxu0 %v38
  %166 = vmatprep.subr.mxu0 0.0
  %167 = vmatpush1.msra.mxu0 %v37
  %168 = vmatprep.subr.mxu0 0.0
  %169 = vmatpush1.msra.mxu0 %v36
  %170 = vmatprep.subr.mxu0 0.0
  %171 = vmatpush1.msra.mxu0 %v35
  %172 = vmatprep.subr.mxu0 0.0
  %173 = vmatpush1.msra.mxu0 %v34
  %174 = vmatprep.subr.mxu0 0.0
  %175 = vmatpush1.msra.mxu0 %v33
  %176 = vmatprep.subr.mxu0 0.0
  %177 = vmatpush1.msra.mxu0 %v32
  %178 = vmatprep.subr.mxu0 0.0
  %179 = vmatpush1.msra.mxu0 %v31
  %180 = vmatprep.subr.mxu0 0.0
  %181 = vmatpush1.msra.mxu0 %v30
  %182 = vmatprep.subr.mxu0 0.0
  %183 = vmatpush1.msra.mxu0 %v29
  %184 = vmatprep.subr.mxu0 0.0
  %185 = vmatpush1.msra.mxu0 %v28
  %186 = vmatprep.subr.mxu0 0.0
  %187 = vmatpush1.msra.mxu0 %v27
  %188 = vmatprep.subr.mxu0 0.0
  %189 = vmatpush1.msra.mxu0 %v26
  %190 = vmatprep.subr.mxu0 0.0
  %191 = vmatpush1.msra.mxu0 %v25
  %192 = vmatprep.subr.mxu0 0.0
  %193 = vmatpush1.msra.mxu0 %v24
  %194 = vmatprep.subr.mxu0 0.0
  %195 = vmatpush1.msra.mxu0 %v23
  %196 = vmatprep.subr.mxu0 0.0
  %197 = vmatpush2.msra.mxu0 0.0
  %198 = vmatprep.subr.mxu0 0.0
  %199 = vmatpush2.msra.mxu0 0.0
  %200 = vmatprep.subr.mxu0 0.0
  %201 = vmatpush2.msra.mxu0 0.0
  %202 = vmatprep.subr.mxu0 0.0
  %203 = vmatpush2.msra.mxu0 0.0
  %204 = vmatprep.subr.mxu0 0.0
  %205 = vmatpush2.msra.mxu0 0.0
  %206 = vmatprep.subr.mxu0 0.0
  %207 = vmatpush2.msra.mxu0 0.0
  %208 = vmatprep.subr.mxu0 0.0
  %209 = vmatpush2.msra.mxu0 0.0
  %210 = vmatprep.subr.mxu0 0.0
  %211 = vmatpush2.msra.mxu0 0.0
  %212 = vmatprep.subr.mxu0 0.0
  %213 = vmatpush2.msra.mxu0 0.0
  %214 = vmatprep.subr.mxu0 0.0
  %215 = vmatpush2.msra.mxu0 0.0
  %216 = vmatprep.subr.mxu0 0.0
  %217 = vmatpush2.msra.mxu0 0.0
  %218 = vmatprep.subr.mxu0 0.0
  %219 = vmatpush2.msra.mxu0 0.0
  %220 = vmatprep.subr.mxu0 0.0
  %221 = vmatpush2.msra.mxu0 0.0
  %222 = vmatprep.subr.mxu0 0.0
  %223 = vmatpush2.msra.mxu0 0.0
  %224 = vmatprep.subr.mxu0 0.0
  %225 = vmatpush2.msra.mxu0 0.0
  %226 = vmatprep.subr.mxu0 0.0
  %227 = vmatpush2.msra.mxu0 0.0
  %228 = vmatprep.mubr.f32.mxu0 0.0
  %229 = vmatmul.mubr.f32.gmra.mxu0 %v71
  %v230 = vpop.f32.mrf.mxu0
  %v231 = vadd.f32 %v146, %v230
  %v232 = vpop.f32.mrf.mxu0
  %233 = vmatprep.mubr.f32.mxu0 0.0
  %234 = vmatmul.mubr.f32.gmra.mxu0 %v72
  %v235 = vpop.f32.mrf.mxu0
  %v236 = vadd.f32 %v151, %v235
  %v237 = vpop.f32.mrf.mxu0
  %238 = vmatprep.mubr.f32.mxu0 0.0
  %239 = vmatmul.mubr.f32.gmra.mxu0 %v73
  %v240 = vpop.f32.mrf.mxu0
  %v241 = vadd.f32 %v156, %v240
  %v242 = vpop.f32.mrf.mxu0
  %243 = vmatprep.mubr.f32.mxu0 0.0
  %244 = vmatmul.mubr.f32.gmra.mxu0 %v74
  %v245 = vpop.f32.mrf.mxu0
  %v246 = vadd.f32 %v161, %v245
  %v247 = vpop.f32.mrf.mxu0
  %248 = vdwg.mxu0
  %v249 = vld [vmem:[%s0 + $0x2] sm:$0xff]
  %v250 = vld [vmem:[%s0 + $0xa] sm:$0xff]
  %v251 = vld [vmem:[%s0 + $0x1a] sm:$0xff]
  %v252 = vld [vmem:[%s0 + $0x22] sm:$0xff]
  %253 = vmatprep.subr.mxu0 0.0
  %254 = vmatpush1.msra.mxu0 %v70
  %255 = vmatprep.subr.mxu0 0.0
  %256 = vmatpush1.msra.mxu0 %v69
  %257 = vmatprep.subr.mxu0 0.0
  %258 = vmatpush1.msra.mxu0 %v68
  %259 = vmatprep.subr.mxu0 0.0
  %260 = vmatpush1.msra.mxu0 %v67
  %261 = vmatprep.subr.mxu0 0.0
  %262 = vmatpush1.msra.mxu0 %v66
  %263 = vmatprep.subr.mxu0 0.0
  %264 = vmatpush1.msra.mxu0 %v65
  %265 = vmatprep.subr.mxu0 0.0
  %266 = vmatpush1.msra.mxu0 %v64
  %267 = vmatprep.subr.mxu0 0.0
  %268 = vmatpush1.msra.mxu0 %v63
  %269 = vmatprep.subr.mxu0 0.0
  %270 = vmatpush1.msra.mxu0 %v62
  %271 = vmatprep.subr.mxu0 0.0
  %272 = vmatpush1.msra.mxu0 %v61
  %273 = vmatprep.subr.mxu0 0.0
  %274 = vmatpush1.msra.mxu0 %v60
  %275 = vmatprep.subr.mxu0 0.0
  %276 = vmatpush1.msra.mxu0 %v59
  %277 = vmatprep.subr.mxu0 0.0
  %278 = vmatpush1.msra.mxu0 %v58
  %279 = vmatprep.subr.mxu0 0.0
  %280 = vmatpush1.msra.mxu0 %v57
  %281 = vmatprep.subr.mxu0 0.0
  %282 = vmatpush1.msra.mxu0 %v56
  %283 = vmatprep.subr.mxu0 0.0
  %284 = vmatpush1.msra.mxu0 %v55
  %285 = vmatprep.subr.mxu0 0.0
  %286 = vmatpush2.msra.mxu0 0.0
  %287 = vmatprep.subr.mxu0 0.0
  %288 = vmatpush2.msra.mxu0 0.0
  %289 = vmatprep.subr.mxu0 0.0
  %290 = vmatpush2.msra.mxu0 0.0
  %291 = vmatprep.subr.mxu0 0.0
  %292 = vmatpush2.msra.mxu0 0.0
  %293 = vmatprep.subr.mxu0 0.0
  %294 = vmatpush2.msra.mxu0 0.0
  %295 = vmatprep.subr.mxu0 0.0
  %296 = vmatpush2.msra.mxu0 0.0
  %297 = vmatprep.subr.mxu0 0.0
  %298 = vmatpush2.msra.mxu0 0.0
  %299 = vmatprep.subr.mxu0 0.0
  %300 = vmatpush2.msra.mxu0 0.0
  %301 = vmatprep.subr.mxu0 0.0
  %302 = vmatpush2.msra.mxu0 0.0
  %303 = vmatprep.subr.mxu0 0.0
  %304 = vmatpush2.msra.mxu0 0.0
  %305 = vmatprep.subr.mxu0 0.0
  %306 = vmatpush2.msra.mxu0 0.0
  %307 = vmatprep.subr.mxu0 0.0
  %308 = vmatpush2.msra.mxu0 0.0
  %309 = vmatprep.subr.mxu0 0.0
  %310 = vmatpush2.msra.mxu0 0.0
  %311 = vmatprep.subr.mxu0 0.0
  %312 = vmatpush2.msra.mxu0 0.0
  %313 = vmatprep.subr.mxu0 0.0
  %314 = vmatpush2.msra.mxu0 0.0
  %315 = vmatprep.subr.mxu0 0.0
  %316 = vmatpush2.msra.mxu0 0.0
  %317 = vmatprep.mubr.f32.mxu0 0.0
  %318 = vmatmul.mubr.f32.gmra.mxu0 %v249
  %v319 = vpop.f32.mrf.mxu0
  %v320 = vadd.f32 0.0, %v319
  %v321 = vpop.f32.mrf.mxu0
  %322 = vmatprep.mubr.f32.mxu0 0.0
  %323 = vmatmul.mubr.f32.gmra.mxu0 %v250
  %v324 = vpop.f32.mrf.mxu0
  %v325 = vadd.f32 0.0, %v324
  %v326 = vpop.f32.mrf.mxu0
  %327 = vmatprep.mubr.f32.mxu0 0.0
  %328 = vmatmul.mubr.f32.gmra.mxu0 %v251
  %v329 = vpop.f32.mrf.mxu0
  %v330 = vadd.f32 0.0, %v329
  %v331 = vpop.f32.mrf.mxu0
  %332 = vmatprep.mubr.f32.mxu0 0.0
  %333 = vmatmul.mubr.f32.gmra.mxu0 %v252
  %v334 = vpop.f32.mrf.mxu0
  %v335 = vadd.f32 0.0, %v334
  %v336 = vpop.f32.mrf.mxu0
  %337 = vdwg.mxu0
  %v338 = vadd.f32 %v231, %v320
  %v339 = vadd.f32 %v236, %v325
  %v340 = vadd.f32 %v241, %v330
  %v341 = vadd.f32 %v246, %v335
  %v342 = vld [vmem:[%s2] sm:$0x1]
  %v344 = vlaneseq
  %v345 = vshrl.u32 %v344, 7
  %v346 = vsub.s32 0, %v345
  %v347 = vrot.slane %v342, %v346
  %v349 = vmul.f32 %v338, %v347
  %v350 = vmul.f32 %v339, %v347
  %v351 = vmul.f32 %v340, %v347
  %v352 = vmul.f32 %v341, %v347
  %v353 = vld [vmem:[%s3] sm:$0x1]
  %v355 = vlaneseq
  %v356 = vshrl.u32 %v355, 7
  %v357 = vsub.s32 0, %v356
  %v358 = vrot.slane %v353, %v357
  %v360 = vadd.f32 %v349, %v358
  %v361 = vadd.f32 %v350, %v358
  %v362 = vadd.f32 %v351, %v358
  %v363 = vadd.f32 %v352, %v358
  %v364 = vmax.f32 %v360, 0.0
  %v365 = vmax.f32 %v361, 0.0
  %v366 = vmax.f32 %v362, 0.0
  %v367 = vmax.f32 %v363, 0.0
  %368 = vst [vmem:[#allocation2] sm:$0x1] %v364
  %v371 = vunpack.c.l.s4 1983009808
  %v372 = vunpack.c.0.s8 %v371
  %v373 = vlaneseq
  %v374 = vshrl.u32 %v373, 7
  %v375 = vsub.s32 %v372, %v374
  %v376 = vrot.slane %v364, %v375
  %v377 = vrot.slane %v376, 7
  %v378 = vrot.slane %v377, 2
  %380 = vst [vmem:[#allocation2 + $0x2] sm:$0x1] %v378
  %v381 = vcombine.high %v376, %v376
  %383 = vst [vmem:[#allocation2 + $0x4] sm:$0x1] %v381
  %v384 = vrot.slane %v381, 7
  %v385 = vrot.slane %v384, 2
  %387 = vst [vmem:[#allocation2 + $0x6] sm:$0x1] %v385
  %v388 = vcombine.high %v364, %v364
  %v390 = vunpack.c.l.s4 1983009808
  %v391 = vunpack.c.0.s8 %v390
  %v392 = vlaneseq
  %v393 = vshrl.u32 %v392, 7
  %v394 = vsub.s32 %v391, %v393
  %v395 = vrot.slane %v388, %v394
  %397 = vst [vmem:[#allocation2 + $0x8] sm:$0x1] %v395
  %v398 = vrot.slane %v395, 7
  %v399 = vrot.slane %v398, 2
  %401 = vst [vmem:[#allocation2 + $0xa] sm:$0x1] %v399
  %v402 = vcombine.high %v395, %v395
  %404 = vst [vmem:[#allocation2 + $0xc] sm:$0x1] %v402
  %v405 = vrot.slane %v402, 7
  %v406 = vrot.slane %v405, 2
  %408 = vst [vmem:[#allocation2 + $0xe] sm:$0x1] %v406
  %409 = vst [vmem:[#allocation2 + $0x10] sm:$0x1] %v365
  %v412 = vunpack.c.l.s4 1983009808
  %v413 = vunpack.c.0.s8 %v412
  %v414 = vlaneseq
  %v415 = vshrl.u32 %v414, 7
  %v416 = vsub.s32 %v413, %v415
  %v417 = vrot.slane %v365, %v416
  %v418 = vrot.slane %v417, 7
  %v419 = vrot.slane %v418, 2
  %421 = vst [vmem:[#allocation2 + $0x12] sm:$0x1] %v419
  %v422 = vcombine.high %v417, %v417
  %424 = vst [vmem:[#allocation2 + $0x14] sm:$0x1] %v422
  %v425 = vrot.slane %v422, 7
  %v426 = vrot.slane %v425, 2
  %428 = vst [vmem:[#allocation2 + $0x16] sm:$0x1] %v426
  %v429 = vcombine.high %v365, %v365
  %v431 = vunpack.c.l.s4 1983009808
  %v432 = vunpack.c.0.s8 %v431
  %v433 = vlaneseq
  %v434 = vshrl.u32 %v433, 7
  %v435 = vsub.s32 %v432, %v434
  %v436 = vrot.slane %v429, %v435
  %438 = vst [vmem:[#allocation2 + $0x18] sm:$0x1] %v436
  %v439 = vrot.slane %v436, 7
  %v440 = vrot.slane %v439, 2
  %442 = vst [vmem:[#allocation2 + $0x1a] sm:$0x1] %v440
  %v443 = vcombine.high %v436, %v436
  %445 = vst [vmem:[#allocation2 + $0x1c] sm:$0x1] %v443
  %v446 = vrot.slane %v443, 7
  %v447 = vrot.slane %v446, 2
  %449 = vst [vmem:[#allocation2 + $0x1e] sm:$0x1] %v447
  %450 = vst [vmem:[#allocation2 + $0x1] sm:$0x1] %v366
  %v453 = vunpack.c.l.s4 1983009808
  %v454 = vunpack.c.0.s8 %v453
  %v455 = vlaneseq
  %v456 = vshrl.u32 %v455, 7
  %v457 = vsub.s32 %v454, %v456
  %v458 = vrot.slane %v366, %v457
  %v459 = vrot.slane %v458, 7
  %v460 = vrot.slane %v459, 2
  %462 = vst [vmem:[#allocation2 + $0x3] sm:$0x1] %v460
  %v463 = vcombine.high %v458, %v458
  %465 = vst [vmem:[#allocation2 + $0x5] sm:$0x1] %v463
  %v466 = vrot.slane %v463, 7
  %v467 = vrot.slane %v466, 2
  %469 = vst [vmem:[#allocation2 + $0x7] sm:$0x1] %v467
  %v470 = vcombine.high %v366, %v366
  %v472 = vunpack.c.l.s4 1983009808
  %v473 = vunpack.c.0.s8 %v472
  %v474 = vlaneseq
  %v475 = vshrl.u32 %v474, 7
  %v476 = vsub.s32 %v473, %v475
  %v477 = vrot.slane %v470, %v476
  %479 = vst [vmem:[#allocation2 + $0x9] sm:$0x1] %v477
  %v480 = vrot.slane %v477, 7
  %v481 = vrot.slane %v480, 2
  %483 = vst [vmem:[#allocation2 + $0xb] sm:$0x1] %v481
  %v484 = vcombine.high %v477, %v477
  %486 = vst [vmem:[#allocation2 + $0xd] sm:$0x1] %v484
  %v487 = vrot.slane %v484, 7
  %v488 = vrot.slane %v487, 2
  %490 = vst [vmem:[#allocation2 + $0xf] sm:$0x1] %v488
  %491 = vst [vmem:[#allocation2 + $0x11] sm:$0x1] %v367
  %v494 = vunpack.c.l.s4 1983009808
  %v495 = vunpack.c.0.s8 %v494
  %v496 = vlaneseq
  %v497 = vshrl.u32 %v496, 7
  %v498 = vsub.s32 %v495, %v497
  %v499 = vrot.slane %v367, %v498
  %v500 = vrot.slane %v499, 7
  %v501 = vrot.slane %v500, 2
  %503 = vst [vmem:[#allocation2 + $0x13] sm:$0x1] %v501
  %v504 = vcombine.high %v499, %v499
  %506 = vst [vmem:[#allocation2 + $0x15] sm:$0x1] %v504
  %v507 = vrot.slane %v504, 7
  %v508 = vrot.slane %v507, 2
  %510 = vst [vmem:[#allocation2 + $0x17] sm:$0x1] %v508
  %v511 = vcombine.high %v367, %v367
  %v513 = vunpack.c.l.s4 1983009808
  %v514 = vunpack.c.0.s8 %v513
  %v515 = vlaneseq
  %v516 = vshrl.u32 %v515, 7
  %v517 = vsub.s32 %v514, %v516
  %v518 = vrot.slane %v511, %v517
  %520 = vst [vmem:[#allocation2 + $0x19] sm:$0x1] %v518
  %v521 = vrot.slane %v518, 7
  %v522 = vrot.slane %v521, 2
  %524 = vst [vmem:[#allocation2 + $0x1b] sm:$0x1] %v522
  %v525 = vcombine.high %v518, %v518
  %527 = vst [vmem:[#allocation2 + $0x1d] sm:$0x1] %v525
  %v528 = vrot.slane %v525, 7
  %v529 = vrot.slane %v528, 2
  %531 = vst [vmem:[#allocation2 + $0x1f] sm:$0x1] %v529
  %v532 = vld [vmem:[#allocation2] sm:$0xff]
  %v533 = vld [vmem:[#allocation2 + $0x8] sm:$0xff]
  %v534 = vld [vmem:[#allocation2 + $0x10] sm:$0xff]
  %v535 = vld [vmem:[#allocation2 + $0x18] sm:$0xff]
  %v536 = vld [vmem:[%s4] sm:$0xff]
  %v537 = vld [vmem:[%s4 + $0x8] sm:$0xff]
  %v538 = vld [vmem:[%s4 + $0x10] sm:$0xff]
  %v539 = vld [vmem:[%s4 + $0x18] sm:$0xff]
  %v540 = vld [vmem:[%s4 + $0x20] sm:$0xff]
  %v541 = vld [vmem:[%s4 + $0x28] sm:$0xff]
  %v542 = vld [vmem:[%s4 + $0x30] sm:$0xff]
  %v543 = vld [vmem:[%s4 + $0x38] sm:$0xff]
  %v544 = vld [vmem:[%s4 + $0x40] sm:$0xff]
  %v545 = vld [vmem:[%s4 + $0x48] sm:$0xff]
  %v546 = vld [vmem:[%s4 + $0x50] sm:$0xff]
  %v547 = vld [vmem:[%s4 + $0x58] sm:$0xff]
  %v548 = vld [vmem:[%s4 + $0x60] sm:$0xff]
  %v549 = vld [vmem:[%s4 + $0x68] sm:$0xff]
  %v550 = vld [vmem:[%s4 + $0x70] sm:$0xff]
  %v551 = vld [vmem:[%s4 + $0x78] sm:$0xff]
  %v552 = vld [vmem:[%s4 + $0x80] sm:$0xff]
  %v553 = vld [vmem:[%s4 + $0x88] sm:$0xff]
  %v554 = vld [vmem:[%s4 + $0x90] sm:$0xff]
  %v555 = vld [vmem:[%s4 + $0x98] sm:$0xff]
  %v556 = vld [vmem:[%s4 + $0xa0] sm:$0xff]
  %v557 = vld [vmem:[%s4 + $0xa8] sm:$0xff]
  %v558 = vld [vmem:[%s4 + $0xb0] sm:$0xff]
  %v559 = vld [vmem:[%s4 + $0xb8] sm:$0xff]
  %v560 = vld [vmem:[%s4 + $0xc0] sm:$0xff]
  %v561 = vld [vmem:[%s4 + $0xc8] sm:$0xff]
  %v562 = vld [vmem:[%s4 + $0xd0] sm:$0xff]
  %v563 = vld [vmem:[%s4 + $0xd8] sm:$0xff]
  %v564 = vld [vmem:[%s4 + $0xe0] sm:$0xff]
  %v565 = vld [vmem:[%s4 + $0xe8] sm:$0xff]
  %v566 = vld [vmem:[%s4 + $0xf0] sm:$0xff]
  %v567 = vld [vmem:[%s4 + $0xf8] sm:$0xff]
  %v568 = vld [vmem:[%s4 + $0x100] sm:$0xff]
  %v569 = vld [vmem:[%s4 + $0x108] sm:$0xff]
  %v570 = vld [vmem:[%s4 + $0x110] sm:$0xff]
  %v571 = vld [vmem:[%s4 + $0x118] sm:$0xff]
  %v572 = vld [vmem:[%s4 + $0x120] sm:$0xff]
  %v573 = vld [vmem:[%s4 + $0x128] sm:$0xff]
  %v574 = vld [vmem:[%s4 + $0x130] sm:$0xff]
  %v575 = vld [vmem:[%s4 + $0x138] sm:$0xff]
  %v576 = vld [vmem:[%s4 + $0x140] sm:$0xff]
  %v577 = vld [vmem:[%s4 + $0x148] sm:$0xff]
  %v578 = vld [vmem:[%s4 + $0x150] sm:$0xff]
  %v579 = vld [vmem:[%s4 + $0x158] sm:$0xff]
  %v580 = vld [vmem:[%s4 + $0x160] sm:$0xff]
  %v581 = vld [vmem:[%s4 + $0x168] sm:$0xff]
  %v582 = vld [vmem:[%s4 + $0x170] sm:$0xff]
  %v583 = vld [vmem:[%s4 + $0x178] sm:$0xff]
  %v584 = vld [vmem:[%s4 + $0x180] sm:$0xff]
  %v585 = vld [vmem:[%s4 + $0x188] sm:$0xff]
  %v586 = vld [vmem:[%s4 + $0x190] sm:$0xff]
  %v587 = vld [vmem:[%s4 + $0x198] sm:$0xff]
  %v588 = vld [vmem:[%s4 + $0x1a0] sm:$0xff]
  %v589 = vld [vmem:[%s4 + $0x1a8] sm:$0xff]
  %v590 = vld [vmem:[%s4 + $0x1b0] sm:$0xff]
  %v591 = vld [vmem:[%s4 + $0x1b8] sm:$0xff]
  %v592 = vld [vmem:[%s4 + $0x1c0] sm:$0xff]
  %v593 = vld [vmem:[%s4 + $0x1c8] sm:$0xff]
  %v594 = vld [vmem:[%s4 + $0x1d0] sm:$0xff]
  %v595 = vld [vmem:[%s4 + $0x1d8] sm:$0xff]
  %v596 = vld [vmem:[%s4 + $0x1e0] sm:$0xff]
  %v597 = vld [vmem:[%s4 + $0x1e8] sm:$0xff]
  %v598 = vld [vmem:[%s4 + $0x1f0] sm:$0xff]
  %v599 = vld [vmem:[%s4 + $0x1f8] sm:$0xff]
  %v600 = vld [vmem:[%s4 + $0x200] sm:$0xff]
  %v601 = vld [vmem:[%s4 + $0x208] sm:$0xff]
  %v602 = vld [vmem:[%s4 + $0x210] sm:$0xff]
  %v603 = vld [vmem:[%s4 + $0x218] sm:$0xff]
  %v604 = vld [vmem:[%s4 + $0x220] sm:$0xff]
  %v605 = vld [vmem:[%s4 + $0x228] sm:$0xff]
  %v606 = vld [vmem:[%s4 + $0x230] sm:$0xff]
  %v607 = vld [vmem:[%s4 + $0x238] sm:$0xff]
  %v608 = vld [vmem:[%s4 + $0x240] sm:$0xff]
  %v609 = vld [vmem:[%s4 + $0x248] sm:$0xff]
  %v610 = vld [vmem:[%s4 + $0x250] sm:$0xff]
  %v611 = vld [vmem:[%s4 + $0x258] sm:$0xff]
  %v612 = vld [vmem:[%s4 + $0x260] sm:$0xff]
  %v613 = vld [vmem:[%s4 + $0x268] sm:$0xff]
  %v614 = vld [vmem:[%s4 + $0x270] sm:$0xff]
  %v615 = vld [vmem:[%s4 + $0x278] sm:$0xff]
  %v616 = vld [vmem:[%s4 + $0x280] sm:$0xff]
  %v617 = vld [vmem:[%s4 + $0x288] sm:$0xff]
  %v618 = vld [vmem:[%s4 + $0x290] sm:$0xff]
  %v619 = vld [vmem:[%s4 + $0x298] sm:$0xff]
  %v620 = vld [vmem:[%s4 + $0x2a0] sm:$0xff]
  %v621 = vld [vmem:[%s4 + $0x2a8] sm:$0xff]
  %v622 = vld [vmem:[%s4 + $0x2b0] sm:$0xff]
  %v623 = vld [vmem:[%s4 + $0x2b8] sm:$0xff]
  %v624 = vld [vmem:[%s4 + $0x2c0] sm:$0xff]
  %v625 = vld [vmem:[%s4 + $0x2c8] sm:$0xff]
  %v626 = vld [vmem:[%s4 + $0x2d0] sm:$0xff]
  %v627 = vld [vmem:[%s4 + $0x2d8] sm:$0xff]
  %v628 = vld [vmem:[%s4 + $0x2e0] sm:$0xff]
  %v629 = vld [vmem:[%s4 + $0x2e8] sm:$0xff]
  %v630 = vld [vmem:[%s4 + $0x2f0] sm:$0xff]
  %v631 = vld [vmem:[%s4 + $0x2f8] sm:$0xff]
  %v632 = vld [vmem:[%s4 + $0x300] sm:$0xff]
  %v633 = vld [vmem:[%s4 + $0x308] sm:$0xff]
  %v634 = vld [vmem:[%s4 + $0x310] sm:$0xff]
  %v635 = vld [vmem:[%s4 + $0x318] sm:$0xff]
  %v636 = vld [vmem:[%s4 + $0x320] sm:$0xff]
  %v637 = vld [vmem:[%s4 + $0x328] sm:$0xff]
  %v638 = vld [vmem:[%s4 + $0x330] sm:$0xff]
  %v639 = vld [vmem:[%s4 + $0x338] sm:$0xff]
  %v640 = vld [vmem:[%s4 + $0x340] sm:$0xff]
  %v641 = vld [vmem:[%s4 + $0x348] sm:$0xff]
  %v642 = vld [vmem:[%s4 + $0x350] sm:$0xff]
  %v643 = vld [vmem:[%s4 + $0x358] sm:$0xff]
  %v644 = vld [vmem:[%s4 + $0x360] sm:$0xff]
  %v645 = vld [vmem:[%s4 + $0x368] sm:$0xff]
  %v646 = vld [vmem:[%s4 + $0x370] sm:$0xff]
  %v647 = vld [vmem:[%s4 + $0x378] sm:$0xff]
  %v648 = vld [vmem:[%s4 + $0x380] sm:$0xff]
  %v649 = vld [vmem:[%s4 + $0x388] sm:$0xff]
  %v650 = vld [vmem:[%s4 + $0x390] sm:$0xff]
  %v651 = vld [vmem:[%s4 + $0x398] sm:$0xff]
  %v652 = vld [vmem:[%s4 + $0x3a0] sm:$0xff]
  %v653 = vld [vmem:[%s4 + $0x3a8] sm:$0xff]
  %v654 = vld [vmem:[%s4 + $0x3b0] sm:$0xff]
  %v655 = vld [vmem:[%s4 + $0x3b8] sm:$0xff]
  %v656 = vld [vmem:[%s4 + $0x3c0] sm:$0xff]
  %v657 = vld [vmem:[%s4 + $0x3c8] sm:$0xff]
  %v658 = vld [vmem:[%s4 + $0x3d0] sm:$0xff]
  %v659 = vld [vmem:[%s4 + $0x3d8] sm:$0xff]
  %v660 = vld [vmem:[%s4 + $0x3e0] sm:$0xff]
  %v661 = vld [vmem:[%s4 + $0x3e8] sm:$0xff]
  %v662 = vld [vmem:[%s4 + $0x3f0] sm:$0xff]
  %v663 = vld [vmem:[%s4 + $0x3f8] sm:$0xff]
  %v664 = vld [vmem:[%s4 + $0x400] sm:$0xff]
  %v665 = vld [vmem:[%s4 + $0x408] sm:$0xff]
  %v666 = vld [vmem:[%s4 + $0x410] sm:$0xff]
  %v667 = vld [vmem:[%s4 + $0x418] sm:$0xff]
  %v668 = vld [vmem:[%s4 + $0x420] sm:$0xff]
  %v669 = vld [vmem:[%s4 + $0x428] sm:$0xff]
  %v670 = vld [vmem:[%s4 + $0x430] sm:$0xff]
  %v671 = vld [vmem:[%s4 + $0x438] sm:$0xff]
  %v672 = vld [vmem:[%s4 + $0x440] sm:$0xff]
  %v673 = vld [vmem:[%s4 + $0x448] sm:$0xff]
  %v674 = vld [vmem:[%s4 + $0x450] sm:$0xff]
  %v675 = vld [vmem:[%s4 + $0x458] sm:$0xff]
  %v676 = vld [vmem:[%s4 + $0x460] sm:$0xff]
  %v677 = vld [vmem:[%s4 + $0x468] sm:$0xff]
  %v678 = vld [vmem:[%s4 + $0x470] sm:$0xff]
  %v679 = vld [vmem:[%s4 + $0x478] sm:$0xff]
  %v680 = vld [vmem:[%s4 + $0x480] sm:$0xff]
  %v681 = vld [vmem:[%s4 + $0x488] sm:$0xff]
  %v682 = vld [vmem:[%s4 + $0x490] sm:$0xff]
  %v683 = vld [vmem:[%s4 + $0x498] sm:$0xff]
  %v684 = vld [vmem:[%s4 + $0x4a0] sm:$0xff]
  %v685 = vld [vmem:[%s4 + $0x4a8] sm:$0xff]
  %v686 = vld [vmem:[%s4 + $0x4b0] sm:$0xff]
  %v687 = vld [vmem:[%s4 + $0x4b8] sm:$0xff]
  %v688 = vld [vmem:[%s4 + $0x4c0] sm:$0xff]
  %v689 = vld [vmem:[%s4 + $0x4c8] sm:$0xff]
  %v690 = vld [vmem:[%s4 + $0x4d0] sm:$0xff]
  %v691 = vld [vmem:[%s4 + $0x4d8] sm:$0xff]
  %v692 = vld [vmem:[%s4 + $0x4e0] sm:$0xff]
  %v693 = vld [vmem:[%s4 + $0x4e8] sm:$0xff]
  %v694 = vld [vmem:[%s4 + $0x4f0] sm:$0xff]
  %v695 = vld [vmem:[%s4 + $0x4f8] sm:$0xff]
  %v696 = vld [vmem:[%s4 + $0x500] sm:$0xff]
  %v697 = vld [vmem:[%s4 + $0x508] sm:$0xff]
  %v698 = vld [vmem:[%s4 + $0x510] sm:$0xff]
  %v699 = vld [vmem:[%s4 + $0x518] sm:$0xff]
  %v700 = vld [vmem:[%s4 + $0x520] sm:$0xff]
  %v701 = vld [vmem:[%s4 + $0x528] sm:$0xff]
  %v702 = vld [vmem:[%s4 + $0x530] sm:$0xff]
  %v703 = vld [vmem:[%s4 + $0x538] sm:$0xff]
  %v704 = vld [vmem:[%s4 + $0x540] sm:$0xff]
  %v705 = vld [vmem:[%s4 + $0x548] sm:$0xff]
  %v706 = vld [vmem:[%s4 + $0x550] sm:$0xff]
  %v707 = vld [vmem:[%s4 + $0x558] sm:$0xff]
  %v708 = vld [vmem:[%s4 + $0x560] sm:$0xff]
  %v709 = vld [vmem:[%s4 + $0x568] sm:$0xff]
  %v710 = vld [vmem:[%s4 + $0x570] sm:$0xff]
  %v711 = vld [vmem:[%s4 + $0x578] sm:$0xff]
  %v712 = vld [vmem:[%s4 + $0x580] sm:$0xff]
  %v713 = vld [vmem:[%s4 + $0x588] sm:$0xff]
  %v714 = vld [vmem:[%s4 + $0x590] sm:$0xff]
  %v715 = vld [vmem:[%s4 + $0x598] sm:$0xff]
  %v716 = vld [vmem:[%s4 + $0x5a0] sm:$0xff]
  %v717 = vld [vmem:[%s4 + $0x5a8] sm:$0xff]
  %v718 = vld [vmem:[%s4 + $0x5b0] sm:$0xff]
  %v719 = vld [vmem:[%s4 + $0x5b8] sm:$0xff]
  %v720 = vld [vmem:[%s4 + $0x5c0] sm:$0xff]
  %v721 = vld [vmem:[%s4 + $0x5c8] sm:$0xff]
  %v722 = vld [vmem:[%s4 + $0x5d0] sm:$0xff]
  %v723 = vld [vmem:[%s4 + $0x5d8] sm:$0xff]
  %v724 = vld [vmem:[%s4 + $0x5e0] sm:$0xff]
  %v725 = vld [vmem:[%s4 + $0x5e8] sm:$0xff]
  %v726 = vld [vmem:[%s4 + $0x5f0] sm:$0xff]
  %v727 = vld [vmem:[%s4 + $0x5f8] sm:$0xff]
  %v728 = vld [vmem:[%s4 + $0x600] sm:$0xff]
  %v729 = vld [vmem:[%s4 + $0x608] sm:$0xff]
  %v730 = vld [vmem:[%s4 + $0x610] sm:$0xff]
  %v731 = vld [vmem:[%s4 + $0x618] sm:$0xff]
  %v732 = vld [vmem:[%s4 + $0x620] sm:$0xff]
  %v733 = vld [vmem:[%s4 + $0x628] sm:$0xff]
  %v734 = vld [vmem:[%s4 + $0x630] sm:$0xff]
  %v735 = vld [vmem:[%s4 + $0x638] sm:$0xff]
  %v736 = vld [vmem:[%s4 + $0x640] sm:$0xff]
  %v737 = vld [vmem:[%s4 + $0x648] sm:$0xff]
  %v738 = vld [vmem:[%s4 + $0x650] sm:$0xff]
  %v739 = vld [vmem:[%s4 + $0x658] sm:$0xff]
  %v740 = vld [vmem:[%s4 + $0x660] sm:$0xff]
  %v741 = vld [vmem:[%s4 + $0x668] sm:$0xff]
  %v742 = vld [vmem:[%s4 + $0x670] sm:$0xff]
  %v743 = vld [vmem:[%s4 + $0x678] sm:$0xff]
  %v744 = vld [vmem:[%s4 + $0x680] sm:$0xff]
  %v745 = vld [vmem:[%s4 + $0x688] sm:$0xff]
  %v746 = vld [vmem:[%s4 + $0x690] sm:$0xff]
  %v747 = vld [vmem:[%s4 + $0x698] sm:$0xff]
  %v748 = vld [vmem:[%s4 + $0x6a0] sm:$0xff]
  %v749 = vld [vmem:[%s4 + $0x6a8] sm:$0xff]
  %v750 = vld [vmem:[%s4 + $0x6b0] sm:$0xff]
  %v751 = vld [vmem:[%s4 + $0x6b8] sm:$0xff]
  %v752 = vld [vmem:[%s4 + $0x6c0] sm:$0xff]
  %v753 = vld [vmem:[%s4 + $0x6c8] sm:$0xff]
  %v754 = vld [vmem:[%s4 + $0x6d0] sm:$0xff]
  %v755 = vld [vmem:[%s4 + $0x6d8] sm:$0xff]
  %v756 = vld [vmem:[%s4 + $0x6e0] sm:$0xff]
  %v757 = vld [vmem:[%s4 + $0x6e8] sm:$0xff]
  %v758 = vld [vmem:[%s4 + $0x6f0] sm:$0xff]
  %v759 = vld [vmem:[%s4 + $0x6f8] sm:$0xff]
  %v760 = vld [vmem:[%s4 + $0x700] sm:$0xff]
  %v761 = vld [vmem:[%s4 + $0x708] sm:$0xff]
  %v762 = vld [vmem:[%s4 + $0x710] sm:$0xff]
  %v763 = vld [vmem:[%s4 + $0x718] sm:$0xff]
  %v764 = vld [vmem:[%s4 + $0x720] sm:$0xff]
  %v765 = vld [vmem:[%s4 + $0x728] sm:$0xff]
  %v766 = vld [vmem:[%s4 + $0x730] sm:$0xff]
  %v767 = vld [vmem:[%s4 + $0x738] sm:$0xff]
  %v768 = vld [vmem:[%s4 + $0x740] sm:$0xff]
  %v769 = vld [vmem:[%s4 + $0x748] sm:$0xff]
  %v770 = vld [vmem:[%s4 + $0x750] sm:$0xff]
  %v771 = vld [vmem:[%s4 + $0x758] sm:$0xff]
  %v772 = vld [vmem:[%s4 + $0x760] sm:$0xff]
  %v773 = vld [vmem:[%s4 + $0x768] sm:$0xff]
  %v774 = vld [vmem:[%s4 + $0x770] sm:$0xff]
  %v775 = vld [vmem:[%s4 + $0x778] sm:$0xff]
  %v776 = vld [vmem:[%s4 + $0x780] sm:$0xff]
  %v777 = vld [vmem:[%s4 + $0x788] sm:$0xff]
  %v778 = vld [vmem:[%s4 + $0x790] sm:$0xff]
  %v779 = vld [vmem:[%s4 + $0x798] sm:$0xff]
  %v780 = vld [vmem:[%s4 + $0x7a0] sm:$0xff]
  %v781 = vld [vmem:[%s4 + $0x7a8] sm:$0xff]
  %v782 = vld [vmem:[%s4 + $0x7b0] sm:$0xff]
  %v783 = vld [vmem:[%s4 + $0x7b8] sm:$0xff]
  %v784 = vld [vmem:[%s4 + $0x7c0] sm:$0xff]
  %v785 = vld [vmem:[%s4 + $0x7c8] sm:$0xff]
  %v786 = vld [vmem:[%s4 + $0x7d0] sm:$0xff]
  %v787 = vld [vmem:[%s4 + $0x7d8] sm:$0xff]
  %v788 = vld [vmem:[%s4 + $0x7e0] sm:$0xff]
  %v789 = vld [vmem:[%s4 + $0x7e8] sm:$0xff]
  %v790 = vld [vmem:[%s4 + $0x7f0] sm:$0xff]
  %v791 = vld [vmem:[%s4 + $0x7f8] sm:$0xff]
  %v792 = vld [vmem:[%s5] sm:$0x1]
  %v794 = vlaneseq
  %v795 = vshrl.u32 %v794, 7
  %v796 = vsub.s32 0, %v795
  %v797 = vrot.slane %v792, %v796
  %v803 = vcombine.high %v532, %v532
  %v805 = vunpack.c.l.s4 1983009808
  %v806 = vunpack.c.0.s8 %v805
  %v807 = vlaneseq
  %v808 = vshrl.u32 %v807, 7
  %v809 = vsub.s32 %v806, %v808
  %v810 = vrot.slane %v532, %v809
  %v812 = vunpack.c.l.s4 1983009808
  %v813 = vunpack.c.0.s8 %v812
  %v814 = vlaneseq
  %v815 = vshrl.u32 %v814, 7
  %v816 = vsub.s32 %v813, %v815
  %v817 = vrot.slane %v803, %v816
  %v818 = vcombine.high %v810, %v810
  %v819 = vcombine.high %v817, %v817
  %v820 = vcombine.high %v533, %v533
  %v822 = vunpack.c.l.s4 1983009808
  %v823 = vunpack.c.0.s8 %v822
  %v824 = vlaneseq
  %v825 = vshrl.u32 %v824, 7
  %v826 = vsub.s32 %v823, %v825
  %v827 = vrot.slane %v533, %v826
  %v829 = vunpack.c.l.s4 1983009808
  %v830 = vunpack.c.0.s8 %v829
  %v831 = vlaneseq
  %v832 = vshrl.u32 %v831, 7
  %v833 = vsub.s32 %v830, %v832
  %v834 = vrot.slane %v820, %v833
  %v835 = vcombine.high %v827, %v827
  %v836 = vcombine.high %v834, %v834
  %v837 = vcombine.high %v534, %v534
  %v839 = vunpack.c.l.s4 1983009808
  %v840 = vunpack.c.0.s8 %v839
  %v841 = vlaneseq
  %v842 = vshrl.u32 %v841, 7
  %v843 = vsub.s32 %v840, %v842
  %v844 = vrot.slane %v534, %v843
  %v846 = vunpack.c.l.s4 1983009808
  %v847 = vunpack.c.0.s8 %v846
  %v848 = vlaneseq
  %v849 = vshrl.u32 %v848, 7
  %v850 = vsub.s32 %v847, %v849
  %v851 = vrot.slane %v837, %v850
  %v852 = vcombine.high %v844, %v844
  %v853 = vcombine.high %v851, %v851
  %v854 = vcombine.high %v535, %v535
  %v856 = vunpack.c.l.s4 1983009808
  %v857 = vunpack.c.0.s8 %v856
  %v858 = vlaneseq
  %v859 = vshrl.u32 %v858, 7
  %v860 = vsub.s32 %v857, %v859
  %v861 = vrot.slane %v535, %v860
  %v863 = vunpack.c.l.s4 1983009808
  %v864 = vunpack.c.0.s8 %v863
  %v865 = vlaneseq
  %v866 = vshrl.u32 %v865, 7
  %v867 = vsub.s32 %v864, %v866
  %v868 = vrot.slane %v854, %v867
  %v869 = vcombine.high %v861, %v861
  %v870 = vcombine.high %v868, %v868
  %887 = vmatprep.subr.mxu0 0.0
  %888 = vmatpush1.msra.mxu0 %v551
  %889 = vmatprep.subr.mxu0 0.0
  %890 = vmatpush1.msra.mxu0 %v550
  %891 = vmatprep.subr.mxu0 0.0
  %892 = vmatpush1.msra.mxu0 %v549
  %893 = vmatprep.subr.mxu0 0.0
  %894 = vmatpush1.msra.mxu0 %v548
  %895 = vmatprep.subr.mxu0 0.0
  %896 = vmatpush1.msra.mxu0 %v547
  %897 = vmatprep.subr.mxu0 0.0
  %898 = vmatpush1.msra.mxu0 %v546
  %899 = vmatprep.subr.mxu0 0.0
  %900 = vmatpush1.msra.mxu0 %v545
  %901 = vmatprep.subr.mxu0 0.0
  %902 = vmatpush1.msra.mxu0 %v544
  %903 = vmatprep.subr.mxu0 0.0
  %904 = vmatpush1.msra.mxu0 %v543
  %905 = vmatprep.subr.mxu0 0.0
  %906 = vmatpush1.msra.mxu0 %v542
  %907 = vmatprep.subr.mxu0 0.0
  %908 = vmatpush1.msra.mxu0 %v541
  %909 = vmatprep.subr.mxu0 0.0
  %910 = vmatpush1.msra.mxu0 %v540
  %911 = vmatprep.subr.mxu0 0.0
  %912 = vmatpush1.msra.mxu0 %v539
  %913 = vmatprep.subr.mxu0 0.0
  %914 = vmatpush1.msra.mxu0 %v538
  %915 = vmatprep.subr.mxu0 0.0
  %916 = vmatpush1.msra.mxu0 %v537
  %917 = vmatprep.subr.mxu0 0.0
  %918 = vmatpush1.msra.mxu0 %v536
  %919 = vmatprep.subr.mxu0 0.0
  %920 = vmatpush2.msra.mxu0 %v567
  %921 = vmatprep.subr.mxu0 0.0
  %922 = vmatpush2.msra.mxu0 %v566
  %923 = vmatprep.subr.mxu0 0.0
  %924 = vmatpush2.msra.mxu0 %v565
  %925 = vmatprep.subr.mxu0 0.0
  %926 = vmatpush2.msra.mxu0 %v564
  %927 = vmatprep.subr.mxu0 0.0
  %928 = vmatpush2.msra.mxu0 %v563
  %929 = vmatprep.subr.mxu0 0.0
  %930 = vmatpush2.msra.mxu0 %v562
  %931 = vmatprep.subr.mxu0 0.0
  %932 = vmatpush2.msra.mxu0 %v561
  %933 = vmatprep.subr.mxu0 0.0
  %934 = vmatpush2.msra.mxu0 %v560
  %935 = vmatprep.subr.mxu0 0.0
  %936 = vmatpush2.msra.mxu0 %v559
  %937 = vmatprep.subr.mxu0 0.0
  %938 = vmatpush2.msra.mxu0 %v558
  %939 = vmatprep.subr.mxu0 0.0
  %940 = vmatpush2.msra.mxu0 %v557
  %941 = vmatprep.subr.mxu0 0.0
  %942 = vmatpush2.msra.mxu0 %v556
  %943 = vmatprep.subr.mxu0 0.0
  %944 = vmatpush2.msra.mxu0 %v555
  %945 = vmatprep.subr.mxu0 0.0
  %946 = vmatpush2.msra.mxu0 %v554
  %947 = vmatprep.subr.mxu0 0.0
  %948 = vmatpush2.msra.mxu0 %v553
  %949 = vmatprep.subr.mxu0 0.0
  %950 = vmatpush2.msra.mxu0 %v552
  %951 = vmatprep.mubr.f32.mxu0 %v818
  %952 = vmatmul.mubr.f32.gmra.mxu0 %v810
  %v953 = vpop.f32.mrf.mxu0
  %v954 = vadd.f32 %v797, %v953
  %v955 = vpop.f32.mrf.mxu0
  %956 = vdwg.mxu0
  %957 = vmatprep.subr.mxu0 0.0
  %958 = vmatpush1.msra.mxu0 %v583
  %959 = vmatprep.subr.mxu0 0.0
  %960 = vmatpush1.msra.mxu0 %v582
  %961 = vmatprep.subr.mxu0 0.0
  %962 = vmatpush1.msra.mxu0 %v581
  %963 = vmatprep.subr.mxu0 0.0
  %964 = vmatpush1.msra.mxu0 %v580
  %965 = vmatprep.subr.mxu0 0.0
  %966 = vmatpush1.msra.mxu0 %v579
  %967 = vmatprep.subr.mxu0 0.0
  %968 = vmatpush1.msra.mxu0 %v578
  %969 = vmatprep.subr.mxu0 0.0
  %970 = vmatpush1.msra.mxu0 %v577
  %971 = vmatprep.subr.mxu0 0.0
  %972 = vmatpush1.msra.mxu0 %v576
  %973 = vmatprep.subr.mxu0 0.0
  %974 = vmatpush1.msra.mxu0 %v575
  %975 = vmatprep.subr.mxu0 0.0
  %976 = vmatpush1.msra.mxu0 %v574
  %977 = vmatprep.subr.mxu0 0.0
  %978 = vmatpush1.msra.mxu0 %v573
  %979 = vmatprep.subr.mxu0 0.0
  %980 = vmatpush1.msra.mxu0 %v572
  %981 = vmatprep.subr.mxu0 0.0
  %982 = vmatpush1.msra.mxu0 %v571
  %983 = vmatprep.subr.mxu0 0.0
  %984 = vmatpush1.msra.mxu0 %v570
  %985 = vmatprep.subr.mxu0 0.0
  %986 = vmatpush1.msra.mxu0 %v569
  %987 = vmatprep.subr.mxu0 0.0
  %988 = vmatpush1.msra.mxu0 %v568
  %989 = vmatprep.subr.mxu0 0.0
  %990 = vmatpush2.msra.mxu0 %v599
  %991 = vmatprep.subr.mxu0 0.0
  %992 = vmatpush2.msra.mxu0 %v598
  %993 = vmatprep.subr.mxu0 0.0
  %994 = vmatpush2.msra.mxu0 %v597
  %995 = vmatprep.subr.mxu0 0.0
  %996 = vmatpush2.msra.mxu0 %v596
  %997 = vmatprep.subr.mxu0 0.0
  %998 = vmatpush2.msra.mxu0 %v595
  %999 = vmatprep.subr.mxu0 0.0
  %1000 = vmatpush2.msra.mxu0 %v594
  %1001 = vmatprep.subr.mxu0 0.0
  %1002 = vmatpush2.msra.mxu0 %v593
  %1003 = vmatprep.subr.mxu0 0.0
  %1004 = vmatpush2.msra.mxu0 %v592
  %1005 = vmatprep.subr.mxu0 0.0
  %1006 = vmatpush2.msra.mxu0 %v591
  %1007 = vmatprep.subr.mxu0 0.0
  %1008 = vmatpush2.msra.mxu0 %v590
  %1009 = vmatprep.subr.mxu0 0.0
  %1010 = vmatpush2.msra.mxu0 %v589
  %1011 = vmatprep.subr.mxu0 0.0
  %1012 = vmatpush2.msra.mxu0 %v588
  %1013 = vmatprep.subr.mxu0 0.0
  %1014 = vmatpush2.msra.mxu0 %v587
  %1015 = vmatprep.subr.mxu0 0.0
  %1016 = vmatpush2.msra.mxu0 %v586
  %1017 = vmatprep.subr.mxu0 0.0
  %1018 = vmatpush2.msra.mxu0 %v585
  %1019 = vmatprep.subr.mxu0 0.0
  %1020 = vmatpush2.msra.mxu0 %v584
  %1021 = vmatprep.mubr.f32.mxu0 %v819
  %1022 = vmatmul.mubr.f32.gmra.mxu0 %v817
  %v1023 = vpop.f32.mrf.mxu0
  %v1024 = vadd.f32 %v954, %v1023
  %v1025 = vpop.f32.mrf.mxu0
  %1026 = vdwg.mxu0
  %1027 = vmatprep.subr.mxu0 0.0
  %1028 = vmatpush1.msra.mxu0 %v615
  %1029 = vmatprep.subr.mxu0 0.0
  %1030 = vmatpush1.msra.mxu0 %v614
  %1031 = vmatprep.subr.mxu0 0.0
  %1032 = vmatpush1.msra.mxu0 %v613
  %1033 = vmatprep.subr.mxu0 0.0
  %1034 = vmatpush1.msra.mxu0 %v612
  %1035 = vmatprep.subr.mxu0 0.0
  %1036 = vmatpush1.msra.mxu0 %v611
  %1037 = vmatprep.subr.mxu0 0.0
  %1038 = vmatpush1.msra.mxu0 %v610
  %1039 = vmatprep.subr.mxu0 0.0
  %1040 = vmatpush1.msra.mxu0 %v609
  %1041 = vmatprep.subr.mxu0 0.0
  %1042 = vmatpush1.msra.mxu0 %v608
  %1043 = vmatprep.subr.mxu0 0.0
  %1044 = vmatpush1.msra.mxu0 %v607
  %1045 = vmatprep.subr.mxu0 0.0
  %1046 = vmatpush1.msra.mxu0 %v606
  %1047 = vmatprep.subr.mxu0 0.0
  %1048 = vmatpush1.msra.mxu0 %v605
  %1049 = vmatprep.subr.mxu0 0.0
  %1050 = vmatpush1.msra.mxu0 %v604
  %1051 = vmatprep.subr.mxu0 0.0
  %1052 = vmatpush1.msra.mxu0 %v603
  %1053 = vmatprep.subr.mxu0 0.0
  %1054 = vmatpush1.msra.mxu0 %v602
  %1055 = vmatprep.subr.mxu0 0.0
  %1056 = vmatpush1.msra.mxu0 %v601
  %1057 = vmatprep.subr.mxu0 0.0
  %1058 = vmatpush1.msra.mxu0 %v600
  %1059 = vmatprep.subr.mxu0 0.0
  %1060 = vmatpush2.msra.mxu0 %v631
  %1061 = vmatprep.subr.mxu0 0.0
  %1062 = vmatpush2.msra.mxu0 %v630
  %1063 = vmatprep.subr.mxu0 0.0
  %1064 = vmatpush2.msra.mxu0 %v629
  %1065 = vmatprep.subr.mxu0 0.0
  %1066 = vmatpush2.msra.mxu0 %v628
  %1067 = vmatprep.subr.mxu0 0.0
  %1068 = vmatpush2.msra.mxu0 %v627
  %1069 = vmatprep.subr.mxu0 0.0
  %1070 = vmatpush2.msra.mxu0 %v626
  %1071 = vmatprep.subr.mxu0 0.0
  %1072 = vmatpush2.msra.mxu0 %v625
  %1073 = vmatprep.subr.mxu0 0.0
  %1074 = vmatpush2.msra.mxu0 %v624
  %1075 = vmatprep.subr.mxu0 0.0
  %1076 = vmatpush2.msra.mxu0 %v623
  %1077 = vmatprep.subr.mxu0 0.0
  %1078 = vmatpush2.msra.mxu0 %v622
  %1079 = vmatprep.subr.mxu0 0.0
  %1080 = vmatpush2.msra.mxu0 %v621
  %1081 = vmatprep.subr.mxu0 0.0
  %1082 = vmatpush2.msra.mxu0 %v620
  %1083 = vmatprep.subr.mxu0 0.0
  %1084 = vmatpush2.msra.mxu0 %v619
  %1085 = vmatprep.subr.mxu0 0.0
  %1086 = vmatpush2.msra.mxu0 %v618
  %1087 = vmatprep.subr.mxu0 0.0
  %1088 = vmatpush2.msra.mxu0 %v617
  %1089 = vmatprep.subr.mxu0 0.0
  %1090 = vmatpush2.msra.mxu0 %v616
  %1091 = vmatprep.mubr.f32.mxu0 %v835
  %1092 = vmatmul.mubr.f32.gmra.mxu0 %v827
  %v1093 = vpop.f32.mrf.mxu0
  %v1094 = vadd.f32 %v1024, %v1093
  %v1095 = vpop.f32.mrf.mxu0
  %1096 = vdwg.mxu0
  %1097 = vmatprep.subr.mxu0 0.0
  %1098 = vmatpush1.msra.mxu0 %v647
  %1099 = vmatprep.subr.mxu0 0.0
  %1100 = vmatpush1.msra.mxu0 %v646
  %1101 = vmatprep.subr.mxu0 0.0
  %1102 = vmatpush1.msra.mxu0 %v645
  %1103 = vmatprep.subr.mxu0 0.0
  %1104 = vmatpush1.msra.mxu0 %v644
  %1105 = vmatprep.subr.mxu0 0.0
  %1106 = vmatpush1.msra.mxu0 %v643
  %1107 = vmatprep.subr.mxu0 0.0
  %1108 = vmatpush1.msra.mxu0 %v642
  %1109 = vmatprep.subr.mxu0 0.0
  %1110 = vmatpush1.msra.mxu0 %v641
  %1111 = vmatprep.subr.mxu0 0.0
  %1112 = vmatpush1.msra.mxu0 %v640
  %1113 = vmatprep.subr.mxu0 0.0
  %1114 = vmatpush1.msra.mxu0 %v639
  %1115 = vmatprep.subr.mxu0 0.0
  %1116 = vmatpush1.msra.mxu0 %v638
  %1117 = vmatprep.subr.mxu0 0.0
  %1118 = vmatpush1.msra.mxu0 %v637
  %1119 = vmatprep.subr.mxu0 0.0
  %1120 = vmatpush1.msra.mxu0 %v636
  %1121 = vmatprep.subr.mxu0 0.0
  %1122 = vmatpush1.msra.mxu0 %v635
  %1123 = vmatprep.subr.mxu0 0.0
  %1124 = vmatpush1.msra.mxu0 %v634
  %1125 = vmatprep.subr.mxu0 0.0
  %1126 = vmatpush1.msra.mxu0 %v633
  %1127 = vmatprep.subr.mxu0 0.0
  %1128 = vmatpush1.msra.mxu0 %v632
  %1129 = vmatprep.subr.mxu0 0.0
  %1130 = vmatpush2.msra.mxu0 %v663
  %1131 = vmatprep.subr.mxu0 0.0
  %1132 = vmatpush2.msra.mxu0 %v662
  %1133 = vmatprep.subr.mxu0 0.0
  %1134 = vmatpush2.msra.mxu0 %v661
  %1135 = vmatprep.subr.mxu0 0.0
  %1136 = vmatpush2.msra.mxu0 %v660
  %1137 = vmatprep.subr.mxu0 0.0
  %1138 = vmatpush2.msra.mxu0 %v659
  %1139 = vmatprep.subr.mxu0 0.0
  %1140 = vmatpush2.msra.mxu0 %v658
  %1141 = vmatprep.subr.mxu0 0.0
  %1142 = vmatpush2.msra.mxu0 %v657
  %1143 = vmatprep.subr.mxu0 0.0
  %1144 = vmatpush2.msra.mxu0 %v656
  %1145 = vmatprep.subr.mxu0 0.0
  %1146 = vmatpush2.msra.mxu0 %v655
  %1147 = vmatprep.subr.mxu0 0.0
  %1148 = vmatpush2.msra.mxu0 %v654
  %1149 = vmatprep.subr.mxu0 0.0
  %1150 = vmatpush2.msra.mxu0 %v653
  %1151 = vmatprep.subr.mxu0 0.0
  %1152 = vmatpush2.msra.mxu0 %v652
  %1153 = vmatprep.subr.mxu0 0.0
  %1154 = vmatpush2.msra.mxu0 %v651
  %1155 = vmatprep.subr.mxu0 0.0
  %1156 = vmatpush2.msra.mxu0 %v650
  %1157 = vmatprep.subr.mxu0 0.0
  %1158 = vmatpush2.msra.mxu0 %v649
  %1159 = vmatprep.subr.mxu0 0.0
  %1160 = vmatpush2.msra.mxu0 %v648
  %1161 = vmatprep.mubr.f32.mxu0 %v836
  %1162 = vmatmul.mubr.f32.gmra.mxu0 %v834
  %v1163 = vpop.f32.mrf.mxu0
  %v1164 = vadd.f32 %v1094, %v1163
  %v1165 = vpop.f32.mrf.mxu0
  %1166 = vdwg.mxu0
  %1167 = vmatprep.subr.mxu0 0.0
  %1168 = vmatpush1.msra.mxu0 %v679
  %1169 = vmatprep.subr.mxu0 0.0
  %1170 = vmatpush1.msra.mxu0 %v678
  %1171 = vmatprep.subr.mxu0 0.0
  %1172 = vmatpush1.msra.mxu0 %v677
  %1173 = vmatprep.subr.mxu0 0.0
  %1174 = vmatpush1.msra.mxu0 %v676
  %1175 = vmatprep.subr.mxu0 0.0
  %1176 = vmatpush1.msra.mxu0 %v675
  %1177 = vmatprep.subr.mxu0 0.0
  %1178 = vmatpush1.msra.mxu0 %v674
  %1179 = vmatprep.subr.mxu0 0.0
  %1180 = vmatpush1.msra.mxu0 %v673
  %1181 = vmatprep.subr.mxu0 0.0
  %1182 = vmatpush1.msra.mxu0 %v672
  %1183 = vmatprep.subr.mxu0 0.0
  %1184 = vmatpush1.msra.mxu0 %v671
  %1185 = vmatprep.subr.mxu0 0.0
  %1186 = vmatpush1.msra.mxu0 %v670
  %1187 = vmatprep.subr.mxu0 0.0
  %1188 = vmatpush1.msra.mxu0 %v669
  %1189 = vmatprep.subr.mxu0 0.0
  %1190 = vmatpush1.msra.mxu0 %v668
  %1191 = vmatprep.subr.mxu0 0.0
  %1192 = vmatpush1.msra.mxu0 %v667
  %1193 = vmatprep.subr.mxu0 0.0
  %1194 = vmatpush1.msra.mxu0 %v666
  %1195 = vmatprep.subr.mxu0 0.0
  %1196 = vmatpush1.msra.mxu0 %v665
  %1197 = vmatprep.subr.mxu0 0.0
  %1198 = vmatpush1.msra.mxu0 %v664
  %1199 = vmatprep.subr.mxu0 0.0
  %1200 = vmatpush2.msra.mxu0 %v695
  %1201 = vmatprep.subr.mxu0 0.0
  %1202 = vmatpush2.msra.mxu0 %v694
  %1203 = vmatprep.subr.mxu0 0.0
  %1204 = vmatpush2.msra.mxu0 %v693
  %1205 = vmatprep.subr.mxu0 0.0
  %1206 = vmatpush2.msra.mxu0 %v692
  %1207 = vmatprep.subr.mxu0 0.0
  %1208 = vmatpush2.msra.mxu0 %v691
  %1209 = vmatprep.subr.mxu0 0.0
  %1210 = vmatpush2.msra.mxu0 %v690
  %1211 = vmatprep.subr.mxu0 0.0
  %1212 = vmatpush2.msra.mxu0 %v689
  %1213 = vmatprep.subr.mxu0 0.0
  %1214 = vmatpush2.msra.mxu0 %v688
  %1215 = vmatprep.subr.mxu0 0.0
  %1216 = vmatpush2.msra.mxu0 %v687
  %1217 = vmatprep.subr.mxu0 0.0
  %1218 = vmatpush2.msra.mxu0 %v686
  %1219 = vmatprep.subr.mxu0 0.0
  %1220 = vmatpush2.msra.mxu0 %v685
  %1221 = vmatprep.subr.mxu0 0.0
  %1222 = vmatpush2.msra.mxu0 %v684
  %1223 = vmatprep.subr.mxu0 0.0
  %1224 = vmatpush2.msra.mxu0 %v683
  %1225 = vmatprep.subr.mxu0 0.0
  %1226 = vmatpush2.msra.mxu0 %v682
  %1227 = vmatprep.subr.mxu0 0.0
  %1228 = vmatpush2.msra.mxu0 %v681
  %1229 = vmatprep.subr.mxu0 0.0
  %1230 = vmatpush2.msra.mxu0 %v680
  %1231 = vmatprep.mubr.f32.mxu0 %v852
  %1232 = vmatmul.mubr.f32.gmra.mxu0 %v844
  %v1233 = vpop.f32.mrf.mxu0
  %v1234 = vadd.f32 %v1164, %v1233
  %v1235 = vpop.f32.mrf.mxu0
  %1236 = vdwg.mxu0
  %1237 = vmatprep.subr.mxu0 0.0
  %1238 = vmatpush1.msra.mxu0 %v711
  %1239 = vmatprep.subr.mxu0 0.0
  %1240 = vmatpush1.msra.mxu0 %v710
  %1241 = vmatprep.subr.mxu0 0.0
  %1242 = vmatpush1.msra.mxu0 %v709
  %1243 = vmatprep.subr.mxu0 0.0
  %1244 = vmatpush1.msra.mxu0 %v708
  %1245 = vmatprep.subr.mxu0 0.0
  %1246 = vmatpush1.msra.mxu0 %v707
  %1247 = vmatprep.subr.mxu0 0.0
  %1248 = vmatpush1.msra.mxu0 %v706
  %1249 = vmatprep.subr.mxu0 0.0
  %1250 = vmatpush1.msra.mxu0 %v705
  %1251 = vmatprep.subr.mxu0 0.0
  %1252 = vmatpush1.msra.mxu0 %v704
  %1253 = vmatprep.subr.mxu0 0.0
  %1254 = vmatpush1.msra.mxu0 %v703
  %1255 = vmatprep.subr.mxu0 0.0
  %1256 = vmatpush1.msra.mxu0 %v702
  %1257 = vmatprep.subr.mxu0 0.0
  %1258 = vmatpush1.msra.mxu0 %v701
  %1259 = vmatprep.subr.mxu0 0.0
  %1260 = vmatpush1.msra.mxu0 %v700
  %1261 = vmatprep.subr.mxu0 0.0
  %1262 = vmatpush1.msra.mxu0 %v699
  %1263 = vmatprep.subr.mxu0 0.0
  %1264 = vmatpush1.msra.mxu0 %v698
  %1265 = vmatprep.subr.mxu0 0.0
  %1266 = vmatpush1.msra.mxu0 %v697
  %1267 = vmatprep.subr.mxu0 0.0
  %1268 = vmatpush1.msra.mxu0 %v696
  %1269 = vmatprep.subr.mxu0 0.0
  %1270 = vmatpush2.msra.mxu0 %v727
  %1271 = vmatprep.subr.mxu0 0.0
  %1272 = vmatpush2.msra.mxu0 %v726
  %1273 = vmatprep.subr.mxu0 0.0
  %1274 = vmatpush2.msra.mxu0 %v725
  %1275 = vmatprep.subr.mxu0 0.0
  %1276 = vmatpush2.msra.mxu0 %v724
  %1277 = vmatprep.subr.mxu0 0.0
  %1278 = vmatpush2.msra.mxu0 %v723
  %1279 = vmatprep.subr.mxu0 0.0
  %1280 = vmatpush2.msra.mxu0 %v722
  %1281 = vmatprep.subr.mxu0 0.0
  %1282 = vmatpush2.msra.mxu0 %v721
  %1283 = vmatprep.subr.mxu0 0.0
  %1284 = vmatpush2.msra.mxu0 %v720
  %1285 = vmatprep.subr.mxu0 0.0
  %1286 = vmatpush2.msra.mxu0 %v719
  %1287 = vmatprep.subr.mxu0 0.0
  %1288 = vmatpush2.msra.mxu0 %v718
  %1289 = vmatprep.subr.mxu0 0.0
  %1290 = vmatpush2.msra.mxu0 %v717
  %1291 = vmatprep.subr.mxu0 0.0
  %1292 = vmatpush2.msra.mxu0 %v716
  %1293 = vmatprep.subr.mxu0 0.0
  %1294 = vmatpush2.msra.mxu0 %v715
  %1295 = vmatprep.subr.mxu0 0.0
  %1296 = vmatpush2.msra.mxu0 %v714
  %1297 = vmatprep.subr.mxu0 0.0
  %1298 = vmatpush2.msra.mxu0 %v713
  %1299 = vmatprep.subr.mxu0 0.0
  %1300 = vmatpush2.msra.mxu0 %v712
  %1301 = vmatprep.mubr.f32.mxu0 %v853
  %1302 = vmatmul.mubr.f32.gmra.mxu0 %v851
  %v1303 = vpop.f32.mrf.mxu0
  %v1304 = vadd.f32 %v1234, %v1303
  %v1305 = vpop.f32.mrf.mxu0
  %1306 = vdwg.mxu0
  %1307 = vmatprep.subr.mxu0 0.0
  %1308 = vmatpush1.msra.mxu0 %v743
  %1309 = vmatprep.subr.mxu0 0.0
  %1310 = vmatpush1.msra.mxu0 %v742
  %1311 = vmatprep.subr.mxu0 0.0
  %1312 = vmatpush1.msra.mxu0 %v741
  %1313 = vmatprep.subr.mxu0 0.0
  %1314 = vmatpush1.msra.mxu0 %v740
  %1315 = vmatprep.subr.mxu0 0.0
  %1316 = vmatpush1.msra.mxu0 %v739
  %1317 = vmatprep.subr.mxu0 0.0
  %1318 = vmatpush1.msra.mxu0 %v738
  %1319 = vmatprep.subr.mxu0 0.0
  %1320 = vmatpush1.msra.mxu0 %v737
  %1321 = vmatprep.subr.mxu0 0.0
  %1322 = vmatpush1.msra.mxu0 %v736
  %1323 = vmatprep.subr.mxu0 0.0
  %1324 = vmatpush1.msra.mxu0 %v735
  %1325 = vmatprep.subr.mxu0 0.0
  %1326 = vmatpush1.msra.mxu0 %v734
  %1327 = vmatprep.subr.mxu0 0.0
  %1328 = vmatpush1.msra.mxu0 %v733
  %1329 = vmatprep.subr.mxu0 0.0
  %1330 = vmatpush1.msra.mxu0 %v732
  %1331 = vmatprep.subr.mxu0 0.0
  %1332 = vmatpush1.msra.mxu0 %v731
  %1333 = vmatprep.subr.mxu0 0.0
  %1334 = vmatpush1.msra.mxu0 %v730
  %1335 = vmatprep.subr.mxu0 0.0
  %1336 = vmatpush1.msra.mxu0 %v729
  %1337 = vmatprep.subr.mxu0 0.0
  %1338 = vmatpush1.msra.mxu0 %v728
  %1339 = vmatprep.subr.mxu0 0.0
  %1340 = vmatpush2.msra.mxu0 %v759
  %1341 = vmatprep.subr.mxu0 0.0
  %1342 = vmatpush2.msra.mxu0 %v758
  %1343 = vmatprep.subr.mxu0 0.0
  %1344 = vmatpush2.msra.mxu0 %v757
  %1345 = vmatprep.subr.mxu0 0.0
  %1346 = vmatpush2.msra.mxu0 %v756
  %1347 = vmatprep.subr.mxu0 0.0
  %1348 = vmatpush2.msra.mxu0 %v755
  %1349 = vmatprep.subr.mxu0 0.0
  %1350 = vmatpush2.msra.mxu0 %v754
  %1351 = vmatprep.subr.mxu0 0.0
  %1352 = vmatpush2.msra.mxu0 %v753
  %1353 = vmatprep.subr.mxu0 0.0
  %1354 = vmatpush2.msra.mxu0 %v752
  %1355 = vmatprep.subr.mxu0 0.0
  %1356 = vmatpush2.msra.mxu0 %v751
  %1357 = vmatprep.subr.mxu0 0.0
  %1358 = vmatpush2.msra.mxu0 %v750
  %1359 = vmatprep.subr.mxu0 0.0
  %1360 = vmatpush2.msra.mxu0 %v749
  %1361 = vmatprep.subr.mxu0 0.0
  %1362 = vmatpush2.msra.mxu0 %v748
  %1363 = vmatprep.subr.mxu0 0.0
  %1364 = vmatpush2.msra.mxu0 %v747
  %1365 = vmatprep.subr.mxu0 0.0
  %1366 = vmatpush2.msra.mxu0 %v746
  %1367 = vmatprep.subr.mxu0 0.0
  %1368 = vmatpush2.msra.mxu0 %v745
  %1369 = vmatprep.subr.mxu0 0.0
  %1370 = vmatpush2.msra.mxu0 %v744
  %1371 = vmatprep.mubr.f32.mxu0 %v869
  %1372 = vmatmul.mubr.f32.gmra.mxu0 %v861
  %v1373 = vpop.f32.mrf.mxu0
  %v1374 = vadd.f32 %v1304, %v1373
  %v1375 = vpop.f32.mrf.mxu0
  %1376 = vdwg.mxu0
  %1377 = vmatprep.subr.mxu0 0.0
  %1378 = vmatpush1.msra.mxu0 %v775
  %1379 = vmatprep.subr.mxu0 0.0
  %1380 = vmatpush1.msra.mxu0 %v774
  %1381 = vmatprep.subr.mxu0 0.0
  %1382 = vmatpush1.msra.mxu0 %v773
  %1383 = vmatprep.subr.mxu0 0.0
  %1384 = vmatpush1.msra.mxu0 %v772
  %1385 = vmatprep.subr.mxu0 0.0
  %1386 = vmatpush1.msra.mxu0 %v771
  %1387 = vmatprep.subr.mxu0 0.0
  %1388 = vmatpush1.msra.mxu0 %v770
  %1389 = vmatprep.subr.mxu0 0.0
  %1390 = vmatpush1.msra.mxu0 %v769
  %1391 = vmatprep.subr.mxu0 0.0
  %1392 = vmatpush1.msra.mxu0 %v768
  %1393 = vmatprep.subr.mxu0 0.0
  %1394 = vmatpush1.msra.mxu0 %v767
  %1395 = vmatprep.subr.mxu0 0.0
  %1396 = vmatpush1.msra.mxu0 %v766
  %1397 = vmatprep.subr.mxu0 0.0
  %1398 = vmatpush1.msra.mxu0 %v765
  %1399 = vmatprep.subr.mxu0 0.0
  %1400 = vmatpush1.msra.mxu0 %v764
  %1401 = vmatprep.subr.mxu0 0.0
  %1402 = vmatpush1.msra.mxu0 %v763
  %1403 = vmatprep.subr.mxu0 0.0
  %1404 = vmatpush1.msra.mxu0 %v762
  %1405 = vmatprep.subr.mxu0 0.0
  %1406 = vmatpush1.msra.mxu0 %v761
  %1407 = vmatprep.subr.mxu0 0.0
  %1408 = vmatpush1.msra.mxu0 %v760
  %1409 = vmatprep.subr.mxu0 0.0
  %1410 = vmatpush2.msra.mxu0 %v791
  %1411 = vmatprep.subr.mxu0 0.0
  %1412 = vmatpush2.msra.mxu0 %v790
  %1413 = vmatprep.subr.mxu0 0.0
  %1414 = vmatpush2.msra.mxu0 %v789
  %1415 = vmatprep.subr.mxu0 0.0
  %1416 = vmatpush2.msra.mxu0 %v788
  %1417 = vmatprep.subr.mxu0 0.0
  %1418 = vmatpush2.msra.mxu0 %v787
  %1419 = vmatprep.subr.mxu0 0.0
  %1420 = vmatpush2.msra.mxu0 %v786
  %1421 = vmatprep.subr.mxu0 0.0
  %1422 = vmatpush2.msra.mxu0 %v785
  %1423 = vmatprep.subr.mxu0 0.0
  %1424 = vmatpush2.msra.mxu0 %v784
  %1425 = vmatprep.subr.mxu0 0.0
  %1426 = vmatpush2.msra.mxu0 %v783
  %1427 = vmatprep.subr.mxu0 0.0
  %1428 = vmatpush2.msra.mxu0 %v782
  %1429 = vmatprep.subr.mxu0 0.0
  %1430 = vmatpush2.msra.mxu0 %v781
  %1431 = vmatprep.subr.mxu0 0.0
  %1432 = vmatpush2.msra.mxu0 %v780
  %1433 = vmatprep.subr.mxu0 0.0
  %1434 = vmatpush2.msra.mxu0 %v779
  %1435 = vmatprep.subr.mxu0 0.0
  %1436 = vmatpush2.msra.mxu0 %v778
  %1437 = vmatprep.subr.mxu0 0.0
  %1438 = vmatpush2.msra.mxu0 %v777
  %1439 = vmatprep.subr.mxu0 0.0
  %1440 = vmatpush2.msra.mxu0 %v776
  %1441 = vmatprep.mubr.f32.mxu0 %v870
  %1442 = vmatmul.mubr.f32.gmra.mxu0 %v868
  %v1443 = vpop.f32.mrf.mxu0
  %v1444 = vadd.f32 %v1374, %v1443
  %v1445 = vpop.f32.mrf.mxu0
  %1446 = vdwg.mxu0
  %vm1447 = vcmask 74752
  %v1448 = vsel %vm1447, %v1444, -inf
  %1449 = vmax.xlane.f32.xlu0 %v1448
  %v1450 = vpop.xlane.xlu0 %1449
  %v1451 = vsub.f32 %v1444, %v1450
  %v1452 = vmul.f32 %v1451, 1.442695
  %v1453 = vpow.pop %v1452
  %v1454 = vsel %vm1447, %v1453, 0.0
  %1455 = vadd.xlane.f32.xlu0 %v1454
  %v1456 = vpop.xlane.xlu0 %1455
  %v1457 = vrcp.pop %v1456
  %vm1458 = vcmask 1041408
  %v1459 = vsel %vm1458, %v1457, 0.0
  %v1460 = vrot.slane %v1459, 4
  %v1461 = vadd.f32 %v1459, %v1460
  %v1462 = vrot.slane %v1461, 2
  %v1463 = vadd.f32 %v1461, %v1462
  %v1464 = vrot.slane %v1463, 1
  %v1465 = vadd.f32 %v1463, %v1464
  %v1466 = vrcp.pop 2.0
  %v1467 = vmul.f32 %v1465, %v1466
  %v1468 = vsub.f32 %v1457, %v1467
  %v1469 = vadd.f32 %v1468, 0.5
  %vm1470 = vcmask 1024
  %1471 = vst.msk [vmem:[%s6] sm:$0x3] %vm1470, %v1469
  // Predicated region
  $region26: #{resnet_forward.1} parent=0 // pred_check
    _
  $region27: #{resnet_forward.1} parent=0 // pred_check_branch
    %1473 = sbr.rel (0) target = $region29
  $region28: #{resnet_forward.1} parent=0 // pred_region
    _
  $region29: #{resnet_forward.1} parent=0 // pred_fallthru
    _
  // Predicated region
  $region30: #{resnet_forward.1} parent=0 // pred_check
    _
  $region31: #{resnet_forward.1} parent=0 // pred_check_branch
    %1475 = sbr.rel (0) target = $region33
  $region32: #{resnet_forward.1} parent=0 // pred_region
    _
  $region33: #{resnet_forward.1} parent=0 // pred_fallthru
    _

</llo_original>
